<compile_context>
chip_gen: v7x
topology: tpu7x:2x2x1
jax: 0.10.0
libtpu: 0.0.40
codegen_flags: <defaults>
</compile_context>

<pallas_src>
import functools
import math

import jax
import jax.numpy as jnp
from jax.experimental import pallas as pl
from jax.experimental.pallas import tpu as pltpu

_LN_EPS = 1e-5
_VMEM_FLOOR = 16 * 1024 * 1024


def _gelu_exact(x):
    # PyTorch F.gelu default = exact erf-based GELU (f32 math).
    return 0.5 * x * (1.0 + jax.lax.erf(x * (1.0 / math.sqrt(2.0))))


def _layer_norm_rows(x_f32, gamma_row, beta_row):
    # LayerNorm over the channel (last) dim; gamma/beta are (1, C) f32 rows.
    mean = jnp.mean(x_f32, axis=-1, keepdims=True)
    var = jnp.mean((x_f32 - mean) ** 2, axis=-1, keepdims=True)
    return (x_f32 - mean) * jax.lax.rsqrt(var + _LN_EPS) * gamma_row + beta_row


def _vmem_limit(est_bytes):
    # Generation-aware cap: 85% of the physical VMEM (v5e/v6e 128 MiB, v7x 64 MiB).
    try:
        cap = int(pltpu.get_tpu_info().vmem_capacity_bytes)
    except Exception:
        cap = 64 * 1024 * 1024
    return int(min(0.85 * cap, max(_VMEM_FLOOR, int(est_bytes))))


# --------------------------------------------------------------------------------------
# Fused DecAttnBlock kernel: one batch per grid step, everything stays in VMEM.
# --------------------------------------------------------------------------------------
def _dec_attn_block_kernel(x_ref, wqkv_ref, bqkv_ref, wo_ref, bo_ref, g1_ref, be1_ref,
                           w1_ref, b1_ref, w2_ref, b2_ref, g2_ref, be2_ref,
                           o_ref, ap_ref, hp_ref,
                           *, num_heads, k, pad, halo):
    x = x_ref[0]                                    # (T, C) compute dtype (bf16 by default)
    T, C = x.shape
    dh = C // num_heads
    cdt = x.dtype
    scale = 1.0 / math.sqrt(dh)
    c2 = w1_ref.shape[2]                            # conv1 out channels (2C)

    # ---------------- MultiHeadAttention (decoder=False, no mask) ----------------
    # fused in-projection: one (T, C) @ (C, 3C) MXU matmul, f32 accumulation
    qkv = jnp.dot(x, wqkv_ref[...], preferred_element_type=jnp.float32) + bqkv_ref[...]

    def split_heads(m):                             # (T, C) -> (H, T, dh), leading-axis concat
        parts = [m[:, h * dh:(h + 1) * dh][None] for h in range(num_heads)]
        stacked = parts[0] if num_heads == 1 else jnp.concatenate(parts, axis=0)
        return stacked.astype(cdt)

    qh = split_heads(qkv[:, :C])
    kh = split_heads(qkv[:, C:2 * C])
    vh = split_heads(qkv[:, 2 * C:])

    # head-batched scores / weighted values; softmax normalization deferred to an EUP recip
    s = jnp.einsum("htd,hsd->hts", qh, kh,
                   preferred_element_type=jnp.float32) * scale        # (H, T, T) f32
    s = s - jnp.max(s, axis=-1, keepdims=True)
    p = jnp.exp(s)                                                    # unnormalized probs
    denom = jnp.sum(p, axis=-1, keepdims=True)                        # (H, T, 1)
    o = jnp.einsum("hts,hsd->htd", p.astype(cdt), vh,
                   preferred_element_type=jnp.float32)                # (H, T, dh) f32
    o = o * pl.reciprocal(denom, approx=True)                         # deferred normalization

    # out-projection accumulated per head against (dh, C) slabs -- no lane concatenate
    out = bo_ref[...]                                                 # (1, C) f32, broadcasts
    for h in range(num_heads):
        out = out + jnp.dot(o[h].astype(cdt), wo_ref[h],
                            preferred_element_type=jnp.float32)

    # PyTorch quirk: norm(dropout(query) + query) with `query` = the attention output.
    a = _layer_norm_rows(out + out, g1_ref[...], be1_ref[...])        # (T, C) f32

    # ---------------- ConvFeedForward: conv1 -> GELU -> conv2 -> +a -> LayerNorm ----------------
    # Zero-padded frame in VMEM scratch (8-row-aligned halo, aligned stores), then each conv is
    # k accumulating MXU matmuls over value-sliced taps -- no im2col lane-concat.
    zc = jnp.zeros((halo, C), jnp.float32)
    ap_ref[0:halo, :] = zc
    ap_ref[halo:halo + T, :] = a
    ap_ref[halo + T:2 * halo + T, :] = zc
    ap = ap_ref[...]

    h1 = b1_ref[...]                                                  # (1, 2C) f32
    for j in range(k):
        off = halo + j - pad
        tap = ap[off:off + T].astype(cdt)
        h1 = h1 + jnp.dot(tap, w1_ref[j], preferred_element_type=jnp.float32)
    h1 = _gelu_exact(h1)                                              # (T, 2C) f32

    z2 = jnp.zeros((halo, c2), jnp.float32)
    hp_ref[0:halo, :] = z2
    hp_ref[halo:halo + T, :] = h1
    hp_ref[halo + T:2 * halo + T, :] = z2
    hp = hp_ref[...]

    y = b2_ref[...]                                                   # (1, C) f32
    for j in range(k):
        off = halo + j - pad
        tap = hp[off:off + T].astype(cdt)
        y = y + jnp.dot(tap, w2_ref[j], preferred_element_type=jnp.float32)

    o_ref[0] = _layer_norm_rows(y + a, g2_ref[...], be2_ref[...]).astype(o_ref.dtype)


@functools.partial(jax.jit, static_argnames=("num_heads", "compute_dtype"))
def dec_attn_block(x, cond, w_in, b_in, w_out, b_out, g1, be1,
                   w1, b1, w2, b2, g2, be2, *, num_heads,
                   compute_dtype=jnp.bfloat16):
    """DecAttnBlock forward: conv_ff(mha(x, x)).  Output dtype = x.dtype."""
    del cond  # TODO(synk): ConvLayerNorm (conditional speaker modulation) undefined in spec.
    B, T, C = x.shape
    assert C % num_heads == 0
    dh = C // num_heads
    c2, c1_in, k = w1.shape                         # (2C, C, k)
    assert c1_in == C and w2.shape == (C, c2, k)
    pad = (k - 1) // 2
    halo = max(8, ((pad + 7) // 8) * 8)             # 8-row-aligned zero halo for the conv taps
    cdt = compute_dtype

    # Host-side weight prep (runs once under jit): MXU operands in compute dtype,
    # bias / LN params as (1, C) f32 rows.
    wqkv = jnp.transpose(w_in).astype(cdt)                              # (C, 3C)
    wo_h = jnp.transpose(w_out).reshape(num_heads, dh, C).astype(cdt)   # per-head out-proj slabs
    w1_t = jnp.transpose(w1, (2, 1, 0)).astype(cdt)                     # (k, C, 2C) tap slabs
    w2_t = jnp.transpose(w2, (2, 1, 0)).astype(cdt)                     # (k, 2C, C)
    row = lambda v: v[None, :].astype(jnp.float32)
    bqkv_r, bo_r = row(b_in), row(b_out)
    g1_r, be1_r = row(g1), row(be1)
    b1_r, b2_r = row(b1), row(b2)
    g2_r, be2_r = row(g2), row(be2)
    x_c = x.astype(cdt)

    # Itemized VMEM estimate (double-buffered blocks already counted; no blanket x2).
    csize = jnp.dtype(cdt).itemsize
    osize = jnp.dtype(x.dtype).itemsize
    w_bytes = (wqkv.size + wo_h.size + w1_t.size + w2_t.size) * csize
    row_bytes = (bqkv_r.size + bo_r.size + g1_r.size + be1_r.size +
                 b1_r.size + b2_r.size + g2_r.size + be2_r.size) * 4
    scratch_bytes = (T + 2 * halo) * (C + c2) * 4
    interm_f32 = 4 * (T * 3 * C                      # qkv
                      + 3 * num_heads * T * dh       # qh/kh/vh
                      + 2 * num_heads * T * T        # scores + probs
                      + num_heads * T * dh           # weighted values
                      + 6 * T * C + 3 * T * c2)      # a / taps / h1 / y / LN temps (rough)
    est = (2 * T * C * csize + 2 * T * C * osize     # in/out blocks, double-buffered
           + 2 * (w_bytes + row_bytes)               # resident weights (worst-case x2 buffers)
           + scratch_bytes + interm_f32
           + (4 << 20))                              # headroom for Mosaic internal scratch

    full = lambda a: pl.BlockSpec(a.shape, lambda b: (0,) * a.ndim)
    kern = functools.partial(_dec_attn_block_kernel,
                             num_heads=num_heads, k=k, pad=pad, halo=halo)

    return pl.pallas_call(
        kern,
        out_shape=jax.ShapeDtypeStruct((B, T, C), x.dtype),
        grid_spec=pltpu.PrefetchScalarGridSpec(
            num_scalar_prefetch=0,
            grid=(B,),
            in_specs=[
                pl.BlockSpec((1, T, C), lambda b: (b, 0, 0)),
                full(wqkv), full(bqkv_r), full(wo_h), full(bo_r),
                full(g1_r), full(be1_r),
                full(w1_t), full(b1_r), full(w2_t), full(b2_r),
                full(g2_r), full(be2_r),
            ],
            out_specs=pl.BlockSpec((1, T, C), lambda b: (b, 0, 0)),
            scratch_shapes=[
                pltpu.VMEM((T + 2 * halo, C), jnp.float32),     # zero-padded `a` frame
                pltpu.VMEM((T + 2 * halo, c2), jnp.float32),    # zero-padded conv1 output
            ],
        ),
        compiler_params=pltpu.CompilerParams(
            dimension_semantics=("parallel",),
            vmem_limit_bytes=_vmem_limit(est)),
    )(x_c, wqkv, bqkv_r, wo_h, bo_r, g1_r, be1_r,
      w1_t, b1_r, w2_t, b2_r, g2_r, be2_r)


# --------------------------------------------------------------------------------------
# Pure-JAX reference (HIGHEST precision) matching the PyTorch forward in eval mode.
# --------------------------------------------------------------------------------------
_HI = jax.lax.Precision.HIGHEST


def _ln_ref(x, g, b):
    m = x.mean(-1, keepdims=True)
    v = ((x - m) ** 2).mean(-1, keepdims=True)
    return (x - m) / jnp.sqrt(v + _LN_EPS) * g + b


def _reference(x, w_in, b_in, w_out, b_out, g1, be1, w1, b1, w2, b2, g2, be2, num_heads):
    B, T, C = x.shape
    dh = C // num_heads
    qkv = jnp.einsum("btc,dc->btd", x, w_in, precision=_HI) + b_in
    q, k, v = qkv[..., :C], qkv[..., C:2 * C], qkv[..., 2 * C:]
    q = q.reshape(B, T, num_heads, dh) / math.sqrt(dh)
    k = k.reshape(B, T, num_heads, dh)
    v = v.reshape(B, T, num_heads, dh)
    s = jnp.einsum("bthd,bshd->bhts", q, k, precision=_HI)
    p = jax.nn.softmax(s, axis=-1)
    o = jnp.einsum("bhts,bshd->bthd", p, v, precision=_HI).reshape(B, T, C)
    o = jnp.einsum("btc,dc->btd", o, w_out, precision=_HI) + b_out
    a = _ln_ref(o + o, g1, be1)

    pad = (w1.shape[2] - 1) // 2
    dn = ("NCH", "OIH", "NCH")
    at = jnp.transpose(a, (0, 2, 1))
    h = jax.lax.conv_general_dilated(at, w1, (1,), [(pad, pad)],
                                     dimension_numbers=dn, precision=_HI)
    h = _gelu_exact(h + b1[None, :, None])
    y = jax.lax.conv_general_dilated(h, w2, (1,), [(pad, pad)],
                                     dimension_numbers=dn, precision=_HI)
    y = jnp.transpose(y + b2[None, :, None], (0, 2, 1)) + a
    return _ln_ref(y, g2, be2)


if __name__ == "__main__":
    # Small shapes consistent with the module: d_hid_decoder = 128 (lane-dense channels),
    # d_head = 2 heads, kernel_size = 3, d_speaker = 64, B = 2, T = 16.
    B, T, C, K, H, D_SPK = 2, 16, 128, 3, 2, 64
    keys = jax.random.split(jax.random.PRNGKey(0), 14)

    x = jax.random.normal(keys[0], (B, T, C), dtype=jnp.float32)
    cond = jax.random.normal(keys[1], (B, D_SPK), dtype=jnp.float32)   # unused (see TODO)

    w_in = 0.05 * jax.random.normal(keys[2], (3 * C, C), dtype=jnp.float32)   # attn in_proj
    b_in = 0.05 * jax.random.normal(keys[3], (3 * C,), dtype=jnp.float32)
    w_out = 0.05 * jax.random.normal(keys[4], (C, C), dtype=jnp.float32)      # attn out_proj
    b_out = 0.05 * jax.random.normal(keys[5], (C,), dtype=jnp.float32)
    g1 = 1.0 + 0.05 * jax.random.normal(keys[6], (C,), dtype=jnp.float32)     # norm after attn
    be1 = 0.05 * jax.random.normal(keys[7], (C,), dtype=jnp.float32)

    w1 = 0.05 * jax.random.normal(keys[8], (2 * C, C, K), dtype=jnp.float32)  # conv1 weight
    b1 = 0.05 * jax.random.normal(keys[9], (2 * C,), dtype=jnp.float32)
    w2 = 0.05 * jax.random.normal(keys[10], (C, 2 * C, K), dtype=jnp.float32) # conv2 weight
    b2 = 0.05 * jax.random.normal(keys[11], (C,), dtype=jnp.float32)
    g2 = 1.0 + 0.05 * jax.random.normal(keys[12], (C,), dtype=jnp.float32)    # norm after conv
    be2 = 0.05 * jax.random.normal(keys[13], (C,), dtype=jnp.float32)

    ref = _reference(x, w_in, b_in, w_out, b_out, g1, be1,
                     w1, b1, w2, b2, g2, be2, H)

    # 1) f32 MXU operands: tight correctness check (catches any layout / indexing bug).
    out32 = dec_attn_block(x, cond, w_in, b_in, w_out, b_out, g1, be1,
                           w1, b1, w2, b2, g2, be2,
                           num_heads=H, compute_dtype=jnp.float32)
    out32 = jax.block_until_ready(out32)
    assert out32.shape == (B, T, C)
    err32 = float(jnp.max(jnp.abs(out32 - ref)))
    assert jnp.allclose(out32, ref, rtol=2e-2, atol=2e-2), err32

    # 2) bf16 MXU operands (perf default): dtype-aware tolerance -- bf16 input rounding through
    #    4 matmul stages gives ~1% relative error; a real bug gives O(1) errors, so these
    #    thresholds still verify correctness.
    out16 = dec_attn_block(x, cond, w_in, b_in, w_out, b_out, g1, be1,
                           w1, b1, w2, b2, g2, be2, num_heads=H)
    out16 = jax.block_until_ready(out16)
    assert out16.shape == (B, T, C)
    rel = float(jnp.linalg.norm(out16 - ref) / jnp.linalg.norm(ref))
    mxe = float(jnp.max(jnp.abs(out16 - ref)))
    assert rel < 5e-2 and mxe < 2.5e-1, (rel, mxe)

    print("KERNEL_OK")
</pallas_src>

<mosaic_0001>
module attributes {stable_mosaic.version = 11 : i64} {
  func.func @_dec_attn_block_kernel(%arg0: i32, %arg1: memref<1x16x128xf32, #tpu.memory_space<vmem>>, %arg2: memref<128x384xf32, #tpu.memory_space<vmem>>, %arg3: memref<1x384xf32, #tpu.memory_space<vmem>>, %arg4: memref<2x64x128xf32, #tpu.memory_space<vmem>>, %arg5: memref<1x128xf32, #tpu.memory_space<vmem>>, %arg6: memref<1x128xf32, #tpu.memory_space<vmem>>, %arg7: memref<1x128xf32, #tpu.memory_space<vmem>>, %arg8: memref<3x128x256xf32, #tpu.memory_space<vmem>>, %arg9: memref<1x256xf32, #tpu.memory_space<vmem>>, %arg10: memref<3x256x128xf32, #tpu.memory_space<vmem>>, %arg11: memref<1x128xf32, #tpu.memory_space<vmem>>, %arg12: memref<1x128xf32, #tpu.memory_space<vmem>>, %arg13: memref<1x128xf32, #tpu.memory_space<vmem>>, %arg14: memref<1x16x128xf32, #tpu.memory_space<vmem>>, %arg15: memref<32x128xf32, #tpu.memory_space<vmem>>, %arg16: memref<32x256xf32, #tpu.memory_space<vmem>>) attributes {dimension_semantics = [#tpu.dimension_semantics<parallel>], iteration_bounds = array<i64: 2>, scalar_prefetch = 0 : i64, scratch_operands = 2 : i64, tpu.core_type = #tpu.core_type<tc>, window_params = [{transform_indices = @transform_0, window_bounds = array<i64: 1, 16, 128>}, {pipeline_mode = #tpu.pipeline_mode<synchronous>, transform_indices = @transform_1, window_bounds = array<i64: 128, 384>}, {pipeline_mode = #tpu.pipeline_mode<synchronous>, transform_indices = @transform_2, window_bounds = array<i64: 1, 384>}, {pipeline_mode = #tpu.pipeline_mode<synchronous>, transform_indices = @transform_3, window_bounds = array<i64: 2, 64, 128>}, {pipeline_mode = #tpu.pipeline_mode<synchronous>, transform_indices = @transform_4, window_bounds = array<i64: 1, 128>}, {pipeline_mode = #tpu.pipeline_mode<synchronous>, transform_indices = @transform_5, window_bounds = array<i64: 1, 128>}, {pipeline_mode = #tpu.pipeline_mode<synchronous>, transform_indices = @transform_6, window_bounds = array<i64: 1, 128>}, {pipeline_mode = #tpu.pipeline_mode<synchronous>, transform_indices = @transform_7, window_bounds = array<i64: 3, 128, 256>}, {pipeline_mode = #tpu.pipeline_mode<synchronous>, transform_indices = @transform_8, window_bounds = array<i64: 1, 256>}, {pipeline_mode = #tpu.pipeline_mode<synchronous>, transform_indices = @transform_9, window_bounds = array<i64: 3, 256, 128>}, {pipeline_mode = #tpu.pipeline_mode<synchronous>, transform_indices = @transform_10, window_bounds = array<i64: 1, 128>}, {pipeline_mode = #tpu.pipeline_mode<synchronous>, transform_indices = @transform_11, window_bounds = array<i64: 1, 128>}, {pipeline_mode = #tpu.pipeline_mode<synchronous>, transform_indices = @transform_12, window_bounds = array<i64: 1, 128>}, {transform_indices = @transform_13, window_bounds = array<i64: 1, 16, 128>}]} {
    %c0 = arith.constant 0 : index
    %c0_0 = arith.constant 0 : index
    %c0_1 = arith.constant 0 : index
    %0 = vector.load %arg1[%c0, %c0_0, %c0_1] : memref<1x16x128xf32, #tpu.memory_space<vmem>>, vector<1x16x128xf32>
    %1 = vector.shape_cast %0 : vector<1x16x128xf32> to vector<16x128xf32>
    %c0_2 = arith.constant 0 : index
    %c0_3 = arith.constant 0 : index
    %2 = vector.load %arg2[%c0_2, %c0_3] : memref<128x384xf32, #tpu.memory_space<vmem>>, vector<128x384xf32>
    %cst = arith.constant dense<0.000000e+00> : vector<16x384xf32>
    %3 = tpu.matmul %1, %2, %cst {dimension_numbers = #tpu.dot_dimension_numbers<[1], [0], [0], [1], [0, 0, 1, 1], [], []>} : vector<16x128xf32>, vector<128x384xf32>, vector<16x384xf32> -> vector<16x384xf32>
    %c0_4 = arith.constant 0 : index
    %c0_5 = arith.constant 0 : index
    %4 = vector.load %arg3[%c0_4, %c0_5] : memref<1x384xf32, #tpu.memory_space<vmem>>, vector<1x384xf32>
    %5 = vector.broadcast %4 : vector<1x384xf32> to vector<16x384xf32>
    %6 = arith.addf %3, %5 : vector<16x384xf32>
    %7 = vector.extract_strided_slice %6 {offsets = [0, 0], sizes = [16, 128], strides = [1, 1]} : vector<16x384xf32> to vector<16x128xf32>
    %8 = vector.extract_strided_slice %7 {offsets = [0, 0], sizes = [16, 64], strides = [1, 1]} : vector<16x128xf32> to vector<16x64xf32>
    %9 = vector.shape_cast %8 : vector<16x64xf32> to vector<1x16x64xf32>
    %10 = vector.extract_strided_slice %7 {offsets = [0, 64], sizes = [16, 64], strides = [1, 1]} : vector<16x128xf32> to vector<16x64xf32>
    %11 = vector.shape_cast %10 : vector<16x64xf32> to vector<1x16x64xf32>
    %12 = tpu.concatenate %9, %11 in 0 : vector<1x16x64xf32>, vector<1x16x64xf32> -> vector<2x16x64xf32>
    %13 = vector.extract_strided_slice %6 {offsets = [0, 128], sizes = [16, 128], strides = [1, 1]} : vector<16x384xf32> to vector<16x128xf32>
    %14 = vector.extract_strided_slice %13 {offsets = [0, 0], sizes = [16, 64], strides = [1, 1]} : vector<16x128xf32> to vector<16x64xf32>
    %15 = vector.shape_cast %14 : vector<16x64xf32> to vector<1x16x64xf32>
    %16 = vector.extract_strided_slice %13 {offsets = [0, 64], sizes = [16, 64], strides = [1, 1]} : vector<16x128xf32> to vector<16x64xf32>
    %17 = vector.shape_cast %16 : vector<16x64xf32> to vector<1x16x64xf32>
    %18 = tpu.concatenate %15, %17 in 0 : vector<1x16x64xf32>, vector<1x16x64xf32> -> vector<2x16x64xf32>
    %19 = vector.extract_strided_slice %6 {offsets = [0, 256], sizes = [16, 128], strides = [1, 1]} : vector<16x384xf32> to vector<16x128xf32>
    %20 = vector.extract_strided_slice %19 {offsets = [0, 0], sizes = [16, 64], strides = [1, 1]} : vector<16x128xf32> to vector<16x64xf32>
    %21 = vector.shape_cast %20 : vector<16x64xf32> to vector<1x16x64xf32>
    %22 = vector.extract_strided_slice %19 {offsets = [0, 64], sizes = [16, 64], strides = [1, 1]} : vector<16x128xf32> to vector<16x64xf32>
    %23 = vector.shape_cast %22 : vector<16x64xf32> to vector<1x16x64xf32>
    %24 = tpu.concatenate %21, %23 in 0 : vector<1x16x64xf32>, vector<1x16x64xf32> -> vector<2x16x64xf32>
    "tpu.trace_start"() <{level = 10 : i32, message = "htd,hsd->hts"}> : () -> ()
    %cst_6 = arith.constant dense<0.000000e+00> : vector<2x16x16xf32>
    %25 = tpu.matmul %12, %18, %cst_6 {dimension_numbers = #tpu.dot_dimension_numbers<[2], [2], [1], [1], [0, 0, 0, 1, 1, 1], [0], [0]>} : vector<2x16x64xf32>, vector<2x16x64xf32>, vector<2x16x16xf32> -> vector<2x16x16xf32>
    "tpu.trace_stop"() : () -> ()
    %cst_7 = arith.constant 1.250000e-01 : f32
    %26 = vector.broadcast %cst_7 : f32 to vector<2x16x16xf32>
    %27 = arith.mulf %25, %26 : vector<2x16x16xf32>
    %cst_8 = arith.constant dense<0xFF800000> : vector<2x16xf32>
    %28 = vector.multi_reduction <maximumf>, %27, %cst_8 [2] : vector<2x16x16xf32> to vector<2x16xf32>
    %29 = vector.shape_cast %28 : vector<2x16xf32> to vector<2x16x1xf32>
    %30 = vector.broadcast %29 : vector<2x16x1xf32> to vector<2x16x16xf32>
    %31 = arith.subf %27, %30 : vector<2x16x16xf32>
    %32 = math.exp %31 : vector<2x16x16xf32>
    %cst_9 = arith.constant dense<0.000000e+00> : vector<2x16xf32>
    %33 = vector.multi_reduction <add>, %32, %cst_9 [2] : vector<2x16x16xf32> to vector<2x16xf32>
    %34 = vector.shape_cast %33 : vector<2x16xf32> to vector<2x16x1xf32>
    "tpu.trace_start"() <{level = 10 : i32, message = "hts,hsd->htd"}> : () -> ()
    %cst_10 = arith.constant dense<0.000000e+00> : vector<2x16x64xf32>
    %35 = tpu.matmul %32, %24, %cst_10 {dimension_numbers = #tpu.dot_dimension_numbers<[2], [1], [1], [2], [0, 0, 0, 1, 1, 2], [0], [0]>} : vector<2x16x16xf32>, vector<2x16x64xf32>, vector<2x16x64xf32> -> vector<2x16x64xf32>
    "tpu.trace_stop"() : () -> ()
    %36 = tpu.reciprocal %34 {approx = true} : vector<2x16x1xf32> -> vector<2x16x1xf32>
    %37 = vector.broadcast %36 : vector<2x16x1xf32> to vector<2x16x64xf32>
    %38 = arith.mulf %35, %37 : vector<2x16x64xf32>
    %c0_11 = arith.constant 0 : index
    %c0_12 = arith.constant 0 : index
    %39 = vector.load %arg5[%c0_11, %c0_12] : memref<1x128xf32, #tpu.memory_space<vmem>>, vector<1x128xf32>
    %40 = vector.extract_strided_slice %38 {offsets = [0, 0, 0], sizes = [1, 16, 64], strides = [1, 1, 1]} : vector<2x16x64xf32> to vector<1x16x64xf32>
    %41 = vector.shape_cast %40 : vector<1x16x64xf32> to vector<16x64xf32>
    %c0_13 = arith.constant 0 : index
    %c0_14 = arith.constant 0 : index
    %c0_15 = arith.constant 0 : index
    %42 = vector.load %arg4[%c0_13, %c0_14, %c0_15] : memref<2x64x128xf32, #tpu.memory_space<vmem>>, vector<1x64x128xf32>
    %43 = vector.shape_cast %42 : vector<1x64x128xf32> to vector<64x128xf32>
    %cst_16 = arith.constant dense<0.000000e+00> : vector<16x128xf32>
    %44 = tpu.matmul %41, %43, %cst_16 {dimension_numbers = #tpu.dot_dimension_numbers<[1], [0], [0], [1], [0, 0, 1, 1], [], []>} : vector<16x64xf32>, vector<64x128xf32>, vector<16x128xf32> -> vector<16x128xf32>
    %45 = vector.broadcast %39 : vector<1x128xf32> to vector<16x128xf32>
    %46 = arith.addf %45, %44 : vector<16x128xf32>
    %47 = vector.extract_strided_slice %38 {offsets = [1, 0, 0], sizes = [1, 16, 64], strides = [1, 1, 1]} : vector<2x16x64xf32> to vector<1x16x64xf32>
    %48 = vector.shape_cast %47 : vector<1x16x64xf32> to vector<16x64xf32>
    %c1 = arith.constant 1 : index
    %c0_17 = arith.constant 0 : index
    %c0_18 = arith.constant 0 : index
    %49 = vector.load %arg4[%c1, %c0_17, %c0_18] : memref<2x64x128xf32, #tpu.memory_space<vmem>>, vector<1x64x128xf32>
    %50 = vector.shape_cast %49 : vector<1x64x128xf32> to vector<64x128xf32>
    %cst_19 = arith.constant dense<0.000000e+00> : vector<16x128xf32>
    %51 = tpu.matmul %48, %50, %cst_19 {dimension_numbers = #tpu.dot_dimension_numbers<[1], [0], [0], [1], [0, 0, 1, 1], [], []>} : vector<16x64xf32>, vector<64x128xf32>, vector<16x128xf32> -> vector<16x128xf32>
    %52 = arith.addf %46, %51 : vector<16x128xf32>
    %53 = arith.addf %52, %52 : vector<16x128xf32>
    %c0_20 = arith.constant 0 : index
    %c0_21 = arith.constant 0 : index
    %54 = vector.load %arg6[%c0_20, %c0_21] : memref<1x128xf32, #tpu.memory_space<vmem>>, vector<1x128xf32>
    %c0_22 = arith.constant 0 : index
    %c0_23 = arith.constant 0 : index
    %55 = vector.load %arg7[%c0_22, %c0_23] : memref<1x128xf32, #tpu.memory_space<vmem>>, vector<1x128xf32>
    %cst_24 = arith.constant dense<0.000000e+00> : vector<16xf32>
    %56 = vector.multi_reduction <add>, %53, %cst_24 [1] : vector<16x128xf32> to vector<16xf32>
    %57 = vector.shape_cast %56 : vector<16xf32> to vector<16x1xf32>
    %cst_25 = arith.constant 1.280000e+02 : f32
    %58 = vector.broadcast %cst_25 : f32 to vector<16x1xf32>
    %59 = arith.divf %57, %58 : vector<16x1xf32>
    %60 = vector.broadcast %59 : vector<16x1xf32> to vector<16x128xf32>
    %61 = arith.subf %53, %60 : vector<16x128xf32>
    %62 = arith.mulf %61, %61 : vector<16x128xf32>
    %cst_26 = arith.constant dense<0.000000e+00> : vector<16xf32>
    %63 = vector.multi_reduction <add>, %62, %cst_26 [1] : vector<16x128xf32> to vector<16xf32>
    %64 = vector.shape_cast %63 : vector<16xf32> to vector<16x1xf32>
    %cst_27 = arith.constant 1.280000e+02 : f32
    %65 = vector.broadcast %cst_27 : f32 to vector<16x1xf32>
    %66 = arith.divf %64, %65 : vector<16x1xf32>
    %67 = vector.broadcast %59 : vector<16x1xf32> to vector<16x128xf32>
    %68 = arith.subf %53, %67 : vector<16x128xf32>
    %cst_28 = arith.constant 9.99999974E-6 : f32
    %69 = vector.broadcast %cst_28 : f32 to vector<16x1xf32>
    %70 = arith.addf %66, %69 : vector<16x1xf32>
    %71 = math.rsqrt %70 : vector<16x1xf32>
    %72 = vector.broadcast %71 : vector<16x1xf32> to vector<16x128xf32>
    %73 = arith.mulf %68, %72 : vector<16x128xf32>
    %74 = vector.broadcast %54 : vector<1x128xf32> to vector<16x128xf32>
    %75 = arith.mulf %73, %74 : vector<16x128xf32>
    %76 = vector.broadcast %55 : vector<1x128xf32> to vector<16x128xf32>
    %77 = arith.addf %75, %76 : vector<16x128xf32>
    %cst_29 = arith.constant 0.000000e+00 : f32
    %78 = vector.broadcast %cst_29 : f32 to vector<8x128xf32>
    %c0_30 = arith.constant 0 : index
    %c0_31 = arith.constant 0 : index
    %79 = vector.load %arg15[%c0_30, %c0_31] : memref<32x128xf32, #tpu.memory_space<vmem>>, vector<8x128xf32>
    tpu.vector_store %arg15[%c0_30, %c0_31], %78 {strides = array<i32>} : memref<32x128xf32, #tpu.memory_space<vmem>>, vector<8x128xf32>,
    %c8 = arith.constant 8 : index
    %c0_32 = arith.constant 0 : index
    %80 = vector.load %arg15[%c8, %c0_32] : memref<32x128xf32, #tpu.memory_space<vmem>>, vector<16x128xf32>
    tpu.vector_store %arg15[%c8, %c0_32], %77 {strides = array<i32>} : memref<32x128xf32, #tpu.memory_space<vmem>>, vector<16x128xf32>,
    %c24 = arith.constant 24 : index
    %c0_33 = arith.constant 0 : index
    %81 = vector.load %arg15[%c24, %c0_33] : memref<32x128xf32, #tpu.memory_space<vmem>>, vector<8x128xf32>
    tpu.vector_store %arg15[%c24, %c0_33], %78 {strides = array<i32>} : memref<32x128xf32, #tpu.memory_space<vmem>>, vector<8x128xf32>,
    %c0_34 = arith.constant 0 : index
    %c0_35 = arith.constant 0 : index
    %82 = vector.load %arg15[%c0_34, %c0_35] : memref<32x128xf32, #tpu.memory_space<vmem>>, vector<32x128xf32>
    %c0_36 = arith.constant 0 : index
    %c0_37 = arith.constant 0 : index
    %83 = vector.load %arg9[%c0_36, %c0_37] : memref<1x256xf32, #tpu.memory_space<vmem>>, vector<1x256xf32>
    %84 = vector.extract_strided_slice %82 {offsets = [7, 0], sizes = [16, 128], strides = [1, 1]} : vector<32x128xf32> to vector<16x128xf32>
    %c0_38 = arith.constant 0 : index
    %c0_39 = arith.constant 0 : index
    %c0_40 = arith.constant 0 : index
    %85 = vector.load %arg8[%c0_38, %c0_39, %c0_40] : memref<3x128x256xf32, #tpu.memory_space<vmem>>, vector<1x128x256xf32>
    %86 = vector.shape_cast %85 : vector<1x128x256xf32> to vector<128x256xf32>
    %cst_41 = arith.constant dense<0.000000e+00> : vector<16x256xf32>
    %87 = tpu.matmul %84, %86, %cst_41 {dimension_numbers = #tpu.dot_dimension_numbers<[1], [0], [0], [1], [0, 0, 1, 1], [], []>} : vector<16x128xf32>, vector<128x256xf32>, vector<16x256xf32> -> vector<16x256xf32>
    %88 = vector.broadcast %83 : vector<1x256xf32> to vector<16x256xf32>
    %89 = arith.addf %88, %87 : vector<16x256xf32>
    %90 = vector.extract_strided_slice %82 {offsets = [8, 0], sizes = [16, 128], strides = [1, 1]} : vector<32x128xf32> to vector<16x128xf32>
    %c1_42 = arith.constant 1 : index
    %c0_43 = arith.constant 0 : index
    %c0_44 = arith.constant 0 : index
    %91 = vector.load %arg8[%c1_42, %c0_43, %c0_44] : memref<3x128x256xf32, #tpu.memory_space<vmem>>, vector<1x128x256xf32>
    %92 = vector.shape_cast %91 : vector<1x128x256xf32> to vector<128x256xf32>
    %cst_45 = arith.constant dense<0.000000e+00> : vector<16x256xf32>
    %93 = tpu.matmul %90, %92, %cst_45 {dimension_numbers = #tpu.dot_dimension_numbers<[1], [0], [0], [1], [0, 0, 1, 1], [], []>} : vector<16x128xf32>, vector<128x256xf32>, vector<16x256xf32> -> vector<16x256xf32>
    %94 = arith.addf %89, %93 : vector<16x256xf32>
    %95 = vector.extract_strided_slice %82 {offsets = [9, 0], sizes = [16, 128], strides = [1, 1]} : vector<32x128xf32> to vector<16x128xf32>
    %c2 = arith.constant 2 : index
    %c0_46 = arith.constant 0 : index
    %c0_47 = arith.constant 0 : index
    %96 = vector.load %arg8[%c2, %c0_46, %c0_47] : memref<3x128x256xf32, #tpu.memory_space<vmem>>, vector<1x128x256xf32>
    %97 = vector.shape_cast %96 : vector<1x128x256xf32> to vector<128x256xf32>
    %cst_48 = arith.constant dense<0.000000e+00> : vector<16x256xf32>
    %98 = tpu.matmul %95, %97, %cst_48 {dimension_numbers = #tpu.dot_dimension_numbers<[1], [0], [0], [1], [0, 0, 1, 1], [], []>} : vector<16x128xf32>, vector<128x256xf32>, vector<16x256xf32> -> vector<16x256xf32>
    %99 = arith.addf %94, %98 : vector<16x256xf32>
    %cst_49 = arith.constant 5.000000e-01 : f32
    %100 = vector.broadcast %cst_49 : f32 to vector<16x256xf32>
    %101 = arith.mulf %100, %99 : vector<16x256xf32>
    %cst_50 = arith.constant 0.707106769 : f32
    %102 = vector.broadcast %cst_50 : f32 to vector<16x256xf32>
    %103 = arith.mulf %99, %102 : vector<16x256xf32>
    %104 = math.erf %103 : vector<16x256xf32>
    %cst_51 = arith.constant 1.000000e+00 : f32
    %105 = vector.broadcast %cst_51 : f32 to vector<16x256xf32>
    %106 = arith.addf %105, %104 : vector<16x256xf32>
    %107 = arith.mulf %101, %106 : vector<16x256xf32>
    %cst_52 = arith.constant 0.000000e+00 : f32
    %108 = vector.broadcast %cst_52 : f32 to vector<8x256xf32>
    %c0_53 = arith.constant 0 : index
    %c0_54 = arith.constant 0 : index
    %109 = vector.load %arg16[%c0_53, %c0_54] : memref<32x256xf32, #tpu.memory_space<vmem>>, vector<8x256xf32>
    tpu.vector_store %arg16[%c0_53, %c0_54], %108 {strides = array<i32>} : memref<32x256xf32, #tpu.memory_space<vmem>>, vector<8x256xf32>,
    %c8_55 = arith.constant 8 : index
    %c0_56 = arith.constant 0 : index
    %110 = vector.load %arg16[%c8_55, %c0_56] : memref<32x256xf32, #tpu.memory_space<vmem>>, vector<16x256xf32>
    tpu.vector_store %arg16[%c8_55, %c0_56], %107 {strides = array<i32>} : memref<32x256xf32, #tpu.memory_space<vmem>>, vector<16x256xf32>,
    %c24_57 = arith.constant 24 : index
    %c0_58 = arith.constant 0 : index
    %111 = vector.load %arg16[%c24_57, %c0_58] : memref<32x256xf32, #tpu.memory_space<vmem>>, vector<8x256xf32>
    tpu.vector_store %arg16[%c24_57, %c0_58], %108 {strides = array<i32>} : memref<32x256xf32, #tpu.memory_space<vmem>>, vector<8x256xf32>,
    %c0_59 = arith.constant 0 : index
    %c0_60 = arith.constant 0 : index
    %112 = vector.load %arg16[%c0_59, %c0_60] : memref<32x256xf32, #tpu.memory_space<vmem>>, vector<32x256xf32>
    %c0_61 = arith.constant 0 : index
    %c0_62 = arith.constant 0 : index
    %113 = vector.load %arg11[%c0_61, %c0_62] : memref<1x128xf32, #tpu.memory_space<vmem>>, vector<1x128xf32>
    %114 = vector.extract_strided_slice %112 {offsets = [7, 0], sizes = [16, 256], strides = [1, 1]} : vector<32x256xf32> to vector<16x256xf32>
    %c0_63 = arith.constant 0 : index
    %c0_64 = arith.constant 0 : index
    %c0_65 = arith.constant 0 : index
    %115 = vector.load %arg10[%c0_63, %c0_64, %c0_65] : memref<3x256x128xf32, #tpu.memory_space<vmem>>, vector<1x256x128xf32>
    %116 = vector.shape_cast %115 : vector<1x256x128xf32> to vector<256x128xf32>
    %cst_66 = arith.constant dense<0.000000e+00> : vector<16x128xf32>
    %117 = tpu.matmul %114, %116, %cst_66 {dimension_numbers = #tpu.dot_dimension_numbers<[1], [0], [0], [1], [0, 0, 1, 1], [], []>} : vector<16x256xf32>, vector<256x128xf32>, vector<16x128xf32> -> vector<16x128xf32>
    %118 = vector.broadcast %113 : vector<1x128xf32> to vector<16x128xf32>
    %119 = arith.addf %118, %117 : vector<16x128xf32>
    %120 = vector.extract_strided_slice %112 {offsets = [8, 0], sizes = [16, 256], strides = [1, 1]} : vector<32x256xf32> to vector<16x256xf32>
    %c1_67 = arith.constant 1 : index
    %c0_68 = arith.constant 0 : index
    %c0_69 = arith.constant 0 : index
    %121 = vector.load %arg10[%c1_67, %c0_68, %c0_69] : memref<3x256x128xf32, #tpu.memory_space<vmem>>, vector<1x256x128xf32>
    %122 = vector.shape_cast %121 : vector<1x256x128xf32> to vector<256x128xf32>
    %cst_70 = arith.constant dense<0.000000e+00> : vector<16x128xf32>
    %123 = tpu.matmul %120, %122, %cst_70 {dimension_numbers = #tpu.dot_dimension_numbers<[1], [0], [0], [1], [0, 0, 1, 1], [], []>} : vector<16x256xf32>, vector<256x128xf32>, vector<16x128xf32> -> vector<16x128xf32>
    %124 = arith.addf %119, %123 : vector<16x128xf32>
    %125 = vector.extract_strided_slice %112 {offsets = [9, 0], sizes = [16, 256], strides = [1, 1]} : vector<32x256xf32> to vector<16x256xf32>
    %c2_71 = arith.constant 2 : index
    %c0_72 = arith.constant 0 : index
    %c0_73 = arith.constant 0 : index
    %126 = vector.load %arg10[%c2_71, %c0_72, %c0_73] : memref<3x256x128xf32, #tpu.memory_space<vmem>>, vector<1x256x128xf32>
    %127 = vector.shape_cast %126 : vector<1x256x128xf32> to vector<256x128xf32>
    %cst_74 = arith.constant dense<0.000000e+00> : vector<16x128xf32>
    %128 = tpu.matmul %125, %127, %cst_74 {dimension_numbers = #tpu.dot_dimension_numbers<[1], [0], [0], [1], [0, 0, 1, 1], [], []>} : vector<16x256xf32>, vector<256x128xf32>, vector<16x128xf32> -> vector<16x128xf32>
    %129 = arith.addf %124, %128 : vector<16x128xf32>
    %130 = arith.addf %129, %77 : vector<16x128xf32>
    %c0_75 = arith.constant 0 : index
    %c0_76 = arith.constant 0 : index
    %131 = vector.load %arg12[%c0_75, %c0_76] : memref<1x128xf32, #tpu.memory_space<vmem>>, vector<1x128xf32>
    %c0_77 = arith.constant 0 : index
    %c0_78 = arith.constant 0 : index
    %132 = vector.load %arg13[%c0_77, %c0_78] : memref<1x128xf32, #tpu.memory_space<vmem>>, vector<1x128xf32>
    %cst_79 = arith.constant dense<0.000000e+00> : vector<16xf32>
    %133 = vector.multi_reduction <add>, %130, %cst_79 [1] : vector<16x128xf32> to vector<16xf32>
    %134 = vector.shape_cast %133 : vector<16xf32> to vector<16x1xf32>
    %cst_80 = arith.constant 1.280000e+02 : f32
    %135 = vector.broadcast %cst_80 : f32 to vector<16x1xf32>
    %136 = arith.divf %134, %135 : vector<16x1xf32>
    %137 = vector.broadcast %136 : vector<16x1xf32> to vector<16x128xf32>
    %138 = arith.subf %130, %137 : vector<16x128xf32>
    %139 = arith.mulf %138, %138 : vector<16x128xf32>
    %cst_81 = arith.constant dense<0.000000e+00> : vector<16xf32>
    %140 = vector.multi_reduction <add>, %139, %cst_81 [1] : vector<16x128xf32> to vector<16xf32>
    %141 = vector.shape_cast %140 : vector<16xf32> to vector<16x1xf32>
    %cst_82 = arith.constant 1.280000e+02 : f32
    %142 = vector.broadcast %cst_82 : f32 to vector<16x1xf32>
    %143 = arith.divf %141, %142 : vector<16x1xf32>
    %144 = vector.broadcast %136 : vector<16x1xf32> to vector<16x128xf32>
    %145 = arith.subf %130, %144 : vector<16x128xf32>
    %cst_83 = arith.constant 9.99999974E-6 : f32
    %146 = vector.broadcast %cst_83 : f32 to vector<16x1xf32>
    %147 = arith.addf %143, %146 : vector<16x1xf32>
    %148 = math.rsqrt %147 : vector<16x1xf32>
    %149 = vector.broadcast %148 : vector<16x1xf32> to vector<16x128xf32>
    %150 = arith.mulf %145, %149 : vector<16x128xf32>
    %151 = vector.broadcast %131 : vector<1x128xf32> to vector<16x128xf32>
    %152 = arith.mulf %150, %151 : vector<16x128xf32>
    %153 = vector.broadcast %132 : vector<1x128xf32> to vector<16x128xf32>
    %154 = arith.addf %152, %153 : vector<16x128xf32>
    %c0_84 = arith.constant 0 : index
    %c0_85 = arith.constant 0 : index
    %c0_86 = arith.constant 0 : index
    %155 = vector.load %arg14[%c0_84, %c0_85, %c0_86] : memref<1x16x128xf32, #tpu.memory_space<vmem>>, vector<1x16x128xf32>
    %156 = vector.shape_cast %155 : vector<1x16x128xf32> to vector<16x128xf32>
    %157 = vector.shape_cast %154 : vector<16x128xf32> to vector<1x16x128xf32>
    tpu.vector_store %arg14[%c0_84, %c0_85, %c0_86], %157 {strides = array<i32>} : memref<1x16x128xf32, #tpu.memory_space<vmem>>, vector<1x16x128xf32>,
    return
  }
  func.func @transform_0(%arg0: i32) -> (i32, i32, i32) {
    %c0_i32 = arith.constant 0 : i32
    %c0_i32_0 = arith.constant 0 : i32
    %c0_i32_1 = arith.constant 0 : i32
    return %arg0, %c0_i32, %c0_i32_0 : i32, i32, i32
  }
  func.func @transform_1(%arg0: i32) -> (i32, i32) {
    %c0_i32 = arith.constant 0 : i32
    %c0_i32_0 = arith.constant 0 : i32
    %c0_i32_1 = arith.constant 0 : i32
    return %c0_i32, %c0_i32_0 : i32, i32
  }
  func.func @transform_2(%arg0: i32) -> (i32, i32) {
    %c0_i32 = arith.constant 0 : i32
    %c0_i32_0 = arith.constant 0 : i32
    %c0_i32_1 = arith.constant 0 : i32
    return %c0_i32, %c0_i32_0 : i32, i32
  }
  func.func @transform_3(%arg0: i32) -> (i32, i32, i32) {
    %c0_i32 = arith.constant 0 : i32
    %c0_i32_0 = arith.constant 0 : i32
    %c0_i32_1 = arith.constant 0 : i32
    %c0_i32_2 = arith.constant 0 : i32
    return %c0_i32, %c0_i32_0, %c0_i32_1 : i32, i32, i32
  }
  func.func @transform_4(%arg0: i32) -> (i32, i32) {
    %c0_i32 = arith.constant 0 : i32
    %c0_i32_0 = arith.constant 0 : i32
    %c0_i32_1 = arith.constant 0 : i32
    return %c0_i32, %c0_i32_0 : i32, i32
  }
  func.func @transform_5(%arg0: i32) -> (i32, i32) {
    %c0_i32 = arith.constant 0 : i32
    %c0_i32_0 = arith.constant 0 : i32
    %c0_i32_1 = arith.constant 0 : i32
    return %c0_i32, %c0_i32_0 : i32, i32
  }
  func.func @transform_6(%arg0: i32) -> (i32, i32) {
    %c0_i32 = arith.constant 0 : i32
    %c0_i32_0 = arith.constant 0 : i32
    %c0_i32_1 = arith.constant 0 : i32
    return %c0_i32, %c0_i32_0 : i32, i32
  }
  func.func @transform_7(%arg0: i32) -> (i32, i32, i32) {
    %c0_i32 = arith.constant 0 : i32
    %c0_i32_0 = arith.constant 0 : i32
    %c0_i32_1 = arith.constant 0 : i32
    %c0_i32_2 = arith.constant 0 : i32
    return %c0_i32, %c0_i32_0, %c0_i32_1 : i32, i32, i32
  }
  func.func @transform_8(%arg0: i32) -> (i32, i32) {
    %c0_i32 = arith.constant 0 : i32
    %c0_i32_0 = arith.constant 0 : i32
    %c0_i32_1 = arith.constant 0 : i32
    return %c0_i32, %c0_i32_0 : i32, i32
  }
  func.func @transform_9(%arg0: i32) -> (i32, i32, i32) {
    %c0_i32 = arith.constant 0 : i32
    %c0_i32_0 = arith.constant 0 : i32
    %c0_i32_1 = arith.constant 0 : i32
    %c0_i32_2 = arith.constant 0 : i32
    return %c0_i32, %c0_i32_0, %c0_i32_1 : i32, i32, i32
  }
  func.func @transform_10(%arg0: i32) -> (i32, i32) {
    %c0_i32 = arith.constant 0 : i32
    %c0_i32_0 = arith.constant 0 : i32
    %c0_i32_1 = arith.constant 0 : i32
    return %c0_i32, %c0_i32_0 : i32, i32
  }
  func.func @transform_11(%arg0: i32) -> (i32, i32) {
    %c0_i32 = arith.constant 0 : i32
    %c0_i32_0 = arith.constant 0 : i32
    %c0_i32_1 = arith.constant 0 : i32
    return %c0_i32, %c0_i32_0 : i32, i32
  }
  func.func @transform_12(%arg0: i32) -> (i32, i32) {
    %c0_i32 = arith.constant 0 : i32
    %c0_i32_0 = arith.constant 0 : i32
    %c0_i32_1 = arith.constant 0 : i32
    return %c0_i32, %c0_i32_0 : i32, i32
  }
  func.func @transform_13(%arg0: i32) -> (i32, i32, i32) {
    %c0_i32 = arith.constant 0 : i32
    %c0_i32_0 = arith.constant 0 : i32
    %c0_i32_1 = arith.constant 0 : i32
    return %arg0, %c0_i32, %c0_i32_0 : i32, i32, i32
  }
}

</mosaic_0001>

<llo_original>
// kernel: dec_attn_block.1
$region0: #{dec_attn_block.1}
  #allocation0 [shape = 'u32[]', space=smem, size = 0x4, offset = 0x4, fixed_abs, tag = 'smem constant byte address 0x4 - core index']
  #allocation1 [shape = 'u32[144,128]{1,0:T(1,128)}', space=vmem, size = 0x12000, scoped, tag = 'internal scratch']
  #allocation2 [shape = 'f32[32,128]{1,0:T(8,128)}', space=vmem, size = 0x4000, scoped, tag = 'scratch operand']
  #allocation3 [shape = 'f32[32,256]{1,0:T(8,128)}', space=vmem, size = 0x8000, scoped, tag = 'scratch operand']
  %s0 = inlined_call_operand.vmem [shape: f32[2,16,128], index: 0, kind: input, shape index: {}]
  %s1 = inlined_call_operand.vmem [shape: f32[128,384], index: 1, kind: input, shape index: {}]
  %s2 = inlined_call_operand.vmem [shape: f32[1,384], index: 2, kind: input, shape index: {}]
  %s3 = inlined_call_operand.vmem [shape: f32[2,64,128], index: 3, kind: input, shape index: {}]
  %s4 = inlined_call_operand.vmem [shape: f32[1,128], index: 4, kind: input, shape index: {}]
  %s5 = inlined_call_operand.vmem [shape: f32[1,128], index: 5, kind: input, shape index: {}]
  %s6 = inlined_call_operand.vmem [shape: f32[1,128], index: 6, kind: input, shape index: {}]
  %s7 = inlined_call_operand.vmem [shape: f32[3,128,256], index: 7, kind: input, shape index: {}]
  %s8 = inlined_call_operand.vmem [shape: f32[1,256], index: 8, kind: input, shape index: {}]
  %s9 = inlined_call_operand.vmem [shape: f32[3,256,128], index: 9, kind: input, shape index: {}]
  %s10 = inlined_call_operand.vmem [shape: f32[1,128], index: 10, kind: input, shape index: {}]
  %s11 = inlined_call_operand.vmem [shape: f32[1,128], index: 11, kind: input, shape index: {}]
  %s12 = inlined_call_operand.vmem [shape: f32[1,128], index: 12, kind: input, shape index: {}]
  %s13 = inlined_call_operand.hbm [shape: f32[2,16,128], index: 13, kind: output, shape index: {}]
  %s14 = sld [smem:[#allocation0]]
  $region85: #{dec_attn_block.1} parent=0
    _
  %s16 = ssub.s32 1, %s14
  %s17 = scalar_select 0, %s16, %s14
  $region1: #{dec_attn_block.1} parent=0
    #allocation4 [shape = 'u8[16384]{0}', space=vmem, size = 0x4000, scoped, tag = 'output window, operand 0']
    #allocation5 [shape = 's32[2]{0}', space=sflag, size = 0x8, scoped, tag = 'scoped memory for dec_attn_block.1']
    %18 = vsyncpa [#allocation5], 0
    %s19 = scalar_lea.sflag [#allocation5], 1
    %20 = vsyncpa %s19, 0
    loop: start=0, step=1, limit=4
    $region2: #{dec_attn_block.1} parent=1 // loop_pre_header
      _
    $region3: #{dec_attn_block.1} parent=1 // loop_header
      %s22 = sphi 0, %s26
      %p23 = scmp.ge.s32.totalorder %s22, 4
      %s32 = sphi 0, %s34
      %s35 = sphi 0, %s32
      %s36 = sphi 0, %s35
      %s52 = sphi 0, %s36
      %s56 = sphi 0, %s56
      %s58 = sphi 0, %s56
      %s59 = sphi 0, %s58
      %s73 = sphi 0, %s59
      %s77 = sphi 0, %s77
      %s79 = sphi 0, %s77
      %s80 = sphi 0, %s79
      %s94 = sphi 0, %s80
      %s98 = sphi 0, %s98
      %s100 = sphi 0, %s98
      %s101 = sphi 0, %s100
      %s115 = sphi 0, %s101
      %s119 = sphi 0, %s119
      %s121 = sphi 0, %s119
      %s122 = sphi 0, %s121
      %s136 = sphi 0, %s122
      %s140 = sphi 0, %s140
      %s142 = sphi 0, %s140
      %s143 = sphi 0, %s142
      %s157 = sphi 0, %s143
      %s161 = sphi 0, %s161
      %s163 = sphi 0, %s161
      %s164 = sphi 0, %s163
      %s178 = sphi 0, %s164
      %s182 = sphi 0, %s182
      %s184 = sphi 0, %s182
      %s185 = sphi 0, %s184
      %s199 = sphi 0, %s185
      %s203 = sphi 0, %s203
      %s205 = sphi 0, %s203
      %s206 = sphi 0, %s205
      %s220 = sphi 0, %s206
      %s224 = sphi 0, %s224
      %s226 = sphi 0, %s224
      %s227 = sphi 0, %s226
      %s241 = sphi 0, %s227
      %s245 = sphi 0, %s245
      %s247 = sphi 0, %s245
      %s248 = sphi 0, %s247
      %s262 = sphi 0, %s248
      %s266 = sphi 0, %s266
      %s268 = sphi 0, %s266
      %s269 = sphi 0, %s268
      %s283 = sphi 0, %s269
      %s287 = sphi 0, %s287
      %s289 = sphi 0, %s287
      %s290 = sphi 0, %s289
      %s304 = sphi 0, %s290
      %s310 = sphi 0, %s312
      %s313 = sphi 0, %s310
      %s314 = sphi 0, %s313
      %s330 = sphi 0, %s314
    $region4: #{dec_attn_block.1} parent=1 // loop_header_branch
      %25 = sbr.rel (%p23) target = $region8
    $region5: #{dec_attn_block.1} parent=1 // loop_body
      %s27 = ssub.s32 %s22, 1
      %s28 = ssub.s32 %s22, 2
      %s29 = sadd.s32 %s22, 1
      %s30 = ssub.s32 %s22, %s29
      %p31 = scmp.eq.s32.totalorder %s30, 0
      %s33 = sadd.s32 %s32, 1
      %s34 = scalar_select %p31, %s32, %s33
      %p37 = pneg %p31
      %p38 = scmp.eq.s32.totalorder %s22, 1
      %p39 = por %p37, %p38
      %p40 = scmp.ne.s32.totalorder %s32, %s35
      %p41 = scmp.eq.s32.totalorder %s22, 0
      %p42 = por %p40, %p41
      %p43 = scmp.ne.s32.totalorder %s32, %s35
      %p44 = scmp.eq.s32.totalorder %s27, 1
      %p45 = por %p43, %p44
      %p46 = scmp.ne.s32.totalorder %s35, %s36
      %p47 = scmp.eq.s32.totalorder %s27, 0
      %p48 = por %p46, %p47
      %p49 = scmp.ne.s32.totalorder %s35, %s36
      %p50 = scmp.eq.s32.totalorder %s28, 1
      %p51 = por %p49, %p50
      %p53 = scmp.ne.s32.totalorder %s36, %s52
      %p54 = scmp.eq.s32.totalorder %s28, 0
      %p55 = por %p53, %p54
      %s57 = sadd.s32 %s56, 1
      %p60 = scmp.eq.s32.totalorder %s22, 1
      %p61 = scmp.ne.s32.totalorder %s56, %s58
      %p62 = scmp.eq.s32.totalorder %s22, 0
      %p63 = por %p61, %p62
      %p64 = scmp.ne.s32.totalorder %s56, %s58
      %p65 = scmp.eq.s32.totalorder %s27, 1
      %p66 = por %p64, %p65
      %p67 = scmp.ne.s32.totalorder %s58, %s59
      %p68 = scmp.eq.s32.totalorder %s27, 0
      %p69 = por %p67, %p68
      %p70 = scmp.ne.s32.totalorder %s58, %s59
      %p71 = scmp.eq.s32.totalorder %s28, 1
      %p72 = por %p70, %p71
      %p74 = scmp.ne.s32.totalorder %s59, %s73
      %p75 = scmp.eq.s32.totalorder %s28, 0
      %p76 = por %p74, %p75
      %s78 = sadd.s32 %s77, 1
      %p81 = scmp.eq.s32.totalorder %s22, 1
      %p82 = scmp.ne.s32.totalorder %s77, %s79
      %p83 = scmp.eq.s32.totalorder %s22, 0
      %p84 = por %p82, %p83
      %p85 = scmp.ne.s32.totalorder %s77, %s79
      %p86 = scmp.eq.s32.totalorder %s27, 1
      %p87 = por %p85, %p86
      %p88 = scmp.ne.s32.totalorder %s79, %s80
      %p89 = scmp.eq.s32.totalorder %s27, 0
      %p90 = por %p88, %p89
      %p91 = scmp.ne.s32.totalorder %s79, %s80
      %p92 = scmp.eq.s32.totalorder %s28, 1
      %p93 = por %p91, %p92
      %p95 = scmp.ne.s32.totalorder %s80, %s94
      %p96 = scmp.eq.s32.totalorder %s28, 0
      %p97 = por %p95, %p96
      %s99 = sadd.s32 %s98, 1
      %p102 = scmp.eq.s32.totalorder %s22, 1
      %p103 = scmp.ne.s32.totalorder %s98, %s100
      %p104 = scmp.eq.s32.totalorder %s22, 0
      %p105 = por %p103, %p104
      %p106 = scmp.ne.s32.totalorder %s98, %s100
      %p107 = scmp.eq.s32.totalorder %s27, 1
      %p108 = por %p106, %p107
      %p109 = scmp.ne.s32.totalorder %s100, %s101
      %p110 = scmp.eq.s32.totalorder %s27, 0
      %p111 = por %p109, %p110
      %p112 = scmp.ne.s32.totalorder %s100, %s101
      %p113 = scmp.eq.s32.totalorder %s28, 1
      %p114 = por %p112, %p113
      %p116 = scmp.ne.s32.totalorder %s101, %s115
      %p117 = scmp.eq.s32.totalorder %s28, 0
      %p118 = por %p116, %p117
      %s120 = sadd.s32 %s119, 1
      %p123 = scmp.eq.s32.totalorder %s22, 1
      %p124 = scmp.ne.s32.totalorder %s119, %s121
      %p125 = scmp.eq.s32.totalorder %s22, 0
      %p126 = por %p124, %p125
      %p127 = scmp.ne.s32.totalorder %s119, %s121
      %p128 = scmp.eq.s32.totalorder %s27, 1
      %p129 = por %p127, %p128
      %p130 = scmp.ne.s32.totalorder %s121, %s122
      %p131 = scmp.eq.s32.totalorder %s27, 0
      %p132 = por %p130, %p131
      %p133 = scmp.ne.s32.totalorder %s121, %s122
      %p134 = scmp.eq.s32.totalorder %s28, 1
      %p135 = por %p133, %p134
      %p137 = scmp.ne.s32.totalorder %s122, %s136
      %p138 = scmp.eq.s32.totalorder %s28, 0
      %p139 = por %p137, %p138
      %s141 = sadd.s32 %s140, 1
      %p144 = scmp.eq.s32.totalorder %s22, 1
      %p145 = scmp.ne.s32.totalorder %s140, %s142
      %p146 = scmp.eq.s32.totalorder %s22, 0
      %p147 = por %p145, %p146
      %p148 = scmp.ne.s32.totalorder %s140, %s142
      %p149 = scmp.eq.s32.totalorder %s27, 1
      %p150 = por %p148, %p149
      %p151 = scmp.ne.s32.totalorder %s142, %s143
      %p152 = scmp.eq.s32.totalorder %s27, 0
      %p153 = por %p151, %p152
      %p154 = scmp.ne.s32.totalorder %s142, %s143
      %p155 = scmp.eq.s32.totalorder %s28, 1
      %p156 = por %p154, %p155
      %p158 = scmp.ne.s32.totalorder %s143, %s157
      %p159 = scmp.eq.s32.totalorder %s28, 0
      %p160 = por %p158, %p159
      %s162 = sadd.s32 %s161, 1
      %p165 = scmp.eq.s32.totalorder %s22, 1
      %p166 = scmp.ne.s32.totalorder %s161, %s163
      %p167 = scmp.eq.s32.totalorder %s22, 0
      %p168 = por %p166, %p167
      %p169 = scmp.ne.s32.totalorder %s161, %s163
      %p170 = scmp.eq.s32.totalorder %s27, 1
      %p171 = por %p169, %p170
      %p172 = scmp.ne.s32.totalorder %s163, %s164
      %p173 = scmp.eq.s32.totalorder %s27, 0
      %p174 = por %p172, %p173
      %p175 = scmp.ne.s32.totalorder %s163, %s164
      %p176 = scmp.eq.s32.totalorder %s28, 1
      %p177 = por %p175, %p176
      %p179 = scmp.ne.s32.totalorder %s164, %s178
      %p180 = scmp.eq.s32.totalorder %s28, 0
      %p181 = por %p179, %p180
      %s183 = sadd.s32 %s182, 1
      %p186 = scmp.eq.s32.totalorder %s22, 1
      %p187 = scmp.ne.s32.totalorder %s182, %s184
      %p188 = scmp.eq.s32.totalorder %s22, 0
      %p189 = por %p187, %p188
      %p190 = scmp.ne.s32.totalorder %s182, %s184
      %p191 = scmp.eq.s32.totalorder %s27, 1
      %p192 = por %p190, %p191
      %p193 = scmp.ne.s32.totalorder %s184, %s185
      %p194 = scmp.eq.s32.totalorder %s27, 0
      %p195 = por %p193, %p194
      %p196 = scmp.ne.s32.totalorder %s184, %s185
      %p197 = scmp.eq.s32.totalorder %s28, 1
      %p198 = por %p196, %p197
      %p200 = scmp.ne.s32.totalorder %s185, %s199
      %p201 = scmp.eq.s32.totalorder %s28, 0
      %p202 = por %p200, %p201
      %s204 = sadd.s32 %s203, 1
      %p207 = scmp.eq.s32.totalorder %s22, 1
      %p208 = scmp.ne.s32.totalorder %s203, %s205
      %p209 = scmp.eq.s32.totalorder %s22, 0
      %p210 = por %p208, %p209
      %p211 = scmp.ne.s32.totalorder %s203, %s205
      %p212 = scmp.eq.s32.totalorder %s27, 1
      %p213 = por %p211, %p212
      %p214 = scmp.ne.s32.totalorder %s205, %s206
      %p215 = scmp.eq.s32.totalorder %s27, 0
      %p216 = por %p214, %p215
      %p217 = scmp.ne.s32.totalorder %s205, %s206
      %p218 = scmp.eq.s32.totalorder %s28, 1
      %p219 = por %p217, %p218
      %p221 = scmp.ne.s32.totalorder %s206, %s220
      %p222 = scmp.eq.s32.totalorder %s28, 0
      %p223 = por %p221, %p222
      %s225 = sadd.s32 %s224, 1
      %p228 = scmp.eq.s32.totalorder %s22, 1
      %p229 = scmp.ne.s32.totalorder %s224, %s226
      %p230 = scmp.eq.s32.totalorder %s22, 0
      %p231 = por %p229, %p230
      %p232 = scmp.ne.s32.totalorder %s224, %s226
      %p233 = scmp.eq.s32.totalorder %s27, 1
      %p234 = por %p232, %p233
      %p235 = scmp.ne.s32.totalorder %s226, %s227
      %p236 = scmp.eq.s32.totalorder %s27, 0
      %p237 = por %p235, %p236
      %p238 = scmp.ne.s32.totalorder %s226, %s227
      %p239 = scmp.eq.s32.totalorder %s28, 1
      %p240 = por %p238, %p239
      %p242 = scmp.ne.s32.totalorder %s227, %s241
      %p243 = scmp.eq.s32.totalorder %s28, 0
      %p244 = por %p242, %p243
      %s246 = sadd.s32 %s245, 1
      %p249 = scmp.eq.s32.totalorder %s22, 1
      %p250 = scmp.ne.s32.totalorder %s245, %s247
      %p251 = scmp.eq.s32.totalorder %s22, 0
      %p252 = por %p250, %p251
      %p253 = scmp.ne.s32.totalorder %s245, %s247
      %p254 = scmp.eq.s32.totalorder %s27, 1
      %p255 = por %p253, %p254
      %p256 = scmp.ne.s32.totalorder %s247, %s248
      %p257 = scmp.eq.s32.totalorder %s27, 0
      %p258 = por %p256, %p257
      %p259 = scmp.ne.s32.totalorder %s247, %s248
      %p260 = scmp.eq.s32.totalorder %s28, 1
      %p261 = por %p259, %p260
      %p263 = scmp.ne.s32.totalorder %s248, %s262
      %p264 = scmp.eq.s32.totalorder %s28, 0
      %p265 = por %p263, %p264
      %s267 = sadd.s32 %s266, 1
      %p270 = scmp.eq.s32.totalorder %s22, 1
      %p271 = scmp.ne.s32.totalorder %s266, %s268
      %p272 = scmp.eq.s32.totalorder %s22, 0
      %p273 = por %p271, %p272
      %p274 = scmp.ne.s32.totalorder %s266, %s268
      %p275 = scmp.eq.s32.totalorder %s27, 1
      %p276 = por %p274, %p275
      %p277 = scmp.ne.s32.totalorder %s268, %s269
      %p278 = scmp.eq.s32.totalorder %s27, 0
      %p279 = por %p277, %p278
      %p280 = scmp.ne.s32.totalorder %s268, %s269
      %p281 = scmp.eq.s32.totalorder %s28, 1
      %p282 = por %p280, %p281
      %p284 = scmp.ne.s32.totalorder %s269, %s283
      %p285 = scmp.eq.s32.totalorder %s28, 0
      %p286 = por %p284, %p285
      %s288 = sadd.s32 %s287, 1
      %p291 = scmp.eq.s32.totalorder %s22, 1
      %p292 = scmp.ne.s32.totalorder %s287, %s289
      %p293 = scmp.eq.s32.totalorder %s22, 0
      %p294 = por %p292, %p293
      %p295 = scmp.ne.s32.totalorder %s287, %s289
      %p296 = scmp.eq.s32.totalorder %s27, 1
      %p297 = por %p295, %p296
      %p298 = scmp.ne.s32.totalorder %s289, %s290
      %p299 = scmp.eq.s32.totalorder %s27, 0
      %p300 = por %p298, %p299
      %p301 = scmp.ne.s32.totalorder %s289, %s290
      %p302 = scmp.eq.s32.totalorder %s28, 1
      %p303 = por %p301, %p302
      %p305 = scmp.ne.s32.totalorder %s290, %s304
      %p306 = scmp.eq.s32.totalorder %s28, 0
      %p307 = por %p305, %p306
      %s308 = ssub.s32 %s22, %s29
      %p309 = scmp.eq.s32.totalorder %s308, 0
      %s311 = sadd.s32 %s310, 1
      %s312 = scalar_select %p309, %s310, %s311
      %p315 = pneg %p309
      %p316 = scmp.eq.s32.totalorder %s22, 1
      %p317 = por %p315, %p316
      %p318 = scmp.ne.s32.totalorder %s310, %s313
      %p319 = scmp.eq.s32.totalorder %s22, 0
      %p320 = por %p318, %p319
      %p321 = scmp.ne.s32.totalorder %s310, %s313
      %p322 = scmp.eq.s32.totalorder %s27, 1
      %p323 = por %p321, %p322
      %p324 = scmp.ne.s32.totalorder %s313, %s314
      %p325 = scmp.eq.s32.totalorder %s27, 0
      %p326 = por %p324, %p325
      %p327 = scmp.ne.s32.totalorder %s313, %s314
      %p328 = scmp.eq.s32.totalorder %s28, 1
      %p329 = por %p327, %p328
      %p331 = scmp.ne.s32.totalorder %s314, %s330
      %p332 = scmp.eq.s32.totalorder %s28, 0
      %p333 = por %p331, %p332
      %p334 = scmp.le.s32.totalorder 1, %s22
      %p335 = scmp.lt.s32.totalorder %s22, 3
      %p336 = pnand %p334, %p335
      %p337 = pneg %p336
      // Predicated region
      $region9: #{dec_attn_block.1} parent=5 // pred_check
        _
      $region10: #{dec_attn_block.1} parent=5 // pred_check_branch
        %339 = sbr.rel (%p336) target = $region12
      $region11: #{dec_attn_block.1} parent=5 // pred_region
        %s340 = ssub.s32 %s22, 1
        // Predicated region
        $region13: #{dec_attn_block.1} parent=11 // pred_check
          %p341 = pneg %p69
        $region14: #{dec_attn_block.1} parent=11 // pred_check_branch
          %343 = sbr.rel (%p341) target = $region16
        $region15: #{dec_attn_block.1} parent=11 // pred_region
          _
        $region16: #{dec_attn_block.1} parent=11 // pred_fallthru
          _
        // Predicated region
        $region17: #{dec_attn_block.1} parent=11 // pred_check
          %p344 = pneg %p90
        $region18: #{dec_attn_block.1} parent=11 // pred_check_branch
          %346 = sbr.rel (%p344) target = $region20
        $region19: #{dec_attn_block.1} parent=11 // pred_region
          _
        $region20: #{dec_attn_block.1} parent=11 // pred_fallthru
          _
        // Predicated region
        $region21: #{dec_attn_block.1} parent=11 // pred_check
          %p347 = pneg %p111
        $region22: #{dec_attn_block.1} parent=11 // pred_check_branch
          %349 = sbr.rel (%p347) target = $region24
        $region23: #{dec_attn_block.1} parent=11 // pred_region
          _
        $region24: #{dec_attn_block.1} parent=11 // pred_fallthru
          _
        // Predicated region
        $region25: #{dec_attn_block.1} parent=11 // pred_check
          %p350 = pneg %p132
        $region26: #{dec_attn_block.1} parent=11 // pred_check_branch
          %352 = sbr.rel (%p350) target = $region28
        $region27: #{dec_attn_block.1} parent=11 // pred_region
          _
        $region28: #{dec_attn_block.1} parent=11 // pred_fallthru
          _
        // Predicated region
        $region29: #{dec_attn_block.1} parent=11 // pred_check
          %p353 = pneg %p153
        $region30: #{dec_attn_block.1} parent=11 // pred_check_branch
          %355 = sbr.rel (%p353) target = $region32
        $region31: #{dec_attn_block.1} parent=11 // pred_region
          _
        $region32: #{dec_attn_block.1} parent=11 // pred_fallthru
          _
        // Predicated region
        $region33: #{dec_attn_block.1} parent=11 // pred_check
          %p356 = pneg %p174
        $region34: #{dec_attn_block.1} parent=11 // pred_check_branch
          %358 = sbr.rel (%p356) target = $region36
        $region35: #{dec_attn_block.1} parent=11 // pred_region
          _
        $region36: #{dec_attn_block.1} parent=11 // pred_fallthru
          _
        // Predicated region
        $region37: #{dec_attn_block.1} parent=11 // pred_check
          %p359 = pneg %p195
        $region38: #{dec_attn_block.1} parent=11 // pred_check_branch
          %361 = sbr.rel (%p359) target = $region40
        $region39: #{dec_attn_block.1} parent=11 // pred_region
          _
        $region40: #{dec_attn_block.1} parent=11 // pred_fallthru
          _
        // Predicated region
        $region41: #{dec_attn_block.1} parent=11 // pred_check
          %p362 = pneg %p216
        $region42: #{dec_attn_block.1} parent=11 // pred_check_branch
          %364 = sbr.rel (%p362) target = $region44
        $region43: #{dec_attn_block.1} parent=11 // pred_region
          _
        $region44: #{dec_attn_block.1} parent=11 // pred_fallthru
          _
        // Predicated region
        $region45: #{dec_attn_block.1} parent=11 // pred_check
          %p365 = pneg %p237
        $region46: #{dec_attn_block.1} parent=11 // pred_check_branch
          %367 = sbr.rel (%p365) target = $region48
        $region47: #{dec_attn_block.1} parent=11 // pred_region
          _
        $region48: #{dec_attn_block.1} parent=11 // pred_fallthru
          _
        // Predicated region
        $region49: #{dec_attn_block.1} parent=11 // pred_check
          %p368 = pneg %p258
        $region50: #{dec_attn_block.1} parent=11 // pred_check_branch
          %370 = sbr.rel (%p368) target = $region52
        $region51: #{dec_attn_block.1} parent=11 // pred_region
          _
        $region52: #{dec_attn_block.1} parent=11 // pred_fallthru
          _
        // Predicated region
        $region53: #{dec_attn_block.1} parent=11 // pred_check
          %p371 = pneg %p279
        $region54: #{dec_attn_block.1} parent=11 // pred_check_branch
          %373 = sbr.rel (%p371) target = $region56
        $region55: #{dec_attn_block.1} parent=11 // pred_region
          _
        $region56: #{dec_attn_block.1} parent=11 // pred_fallthru
          _
        // Predicated region
        $region57: #{dec_attn_block.1} parent=11 // pred_check
          %p374 = pneg %p300
        $region58: #{dec_attn_block.1} parent=11 // pred_check_branch
          %376 = sbr.rel (%p374) target = $region60
        $region59: #{dec_attn_block.1} parent=11 // pred_region
          _
        $region60: #{dec_attn_block.1} parent=11 // pred_fallthru
          _
      $region12: #{dec_attn_block.1} parent=5 // pred_fallthru
        _
      %p377 = scmp.lt.s32.totalorder %s22, 2
      // Predicated region
      $region61: #{dec_attn_block.1} parent=5 // pred_check
        %p378 = pneg %p377
      $region62: #{dec_attn_block.1} parent=5 // pred_check_branch
        %380 = sbr.rel (%p378) target = $region64
      $region63: #{dec_attn_block.1} parent=5 // pred_region
        // Predicated region
        $region65: #{dec_attn_block.1} parent=63 // pred_check
          %p381 = pneg %p42
        $region66: #{dec_attn_block.1} parent=63 // pred_check_branch
          %383 = sbr.rel (%p381) target = $region68
        $region67: #{dec_attn_block.1} parent=63 // pred_region
          %p384 = scmp.lt.s32.totalorder %s22, 1
          %s385 = scalar_select %p384, %s22, 1
          %s386 = smul.addr %s385, 2
          %s387 = smul.addr %s386, 8
          %s388 = scalar_lea.vmem %s0, %s387
        $region68: #{dec_attn_block.1} parent=63 // pred_fallthru
          _
      $region64: #{dec_attn_block.1} parent=5 // pred_fallthru
        _
      %p389 = scmp.le.s32.totalorder 1, %s22
      %p390 = scmp.lt.s32.totalorder %s22, 3
      %p391 = pnand %p389, %p390
      %p392 = pneg %p391
      // Predicated region
      $region69: #{dec_attn_block.1} parent=5 // pred_check
        _
      $region70: #{dec_attn_block.1} parent=5 // pred_check_branch
        %394 = sbr.rel (%p391) target = $region72
      $region71: #{dec_attn_block.1} parent=5 // pred_region
        %s395 = ssub.s32 %s22, 1
        %p396 = scmp.lt.s32.totalorder %s27, 1
        %s397 = scalar_select %p396, %s27, 1
        %s398 = smul.addr %s397, 2
        %s399 = smul.addr %s398, 8
        %s400 = scalar_lea.vmem %s0, %s399
        %p401 = pneg %p48
        %p402 = pneg %p45
        %p403 = pneg %p69
        %p404 = pneg %p66
        %p405 = pneg %p90
        %p406 = pneg %p87
        %p407 = pneg %p111
        %p408 = pneg %p108
        %p409 = pneg %p132
        %p410 = pneg %p129
        %p411 = pneg %p153
        %p412 = pneg %p150
        %p413 = pneg %p174
        %p414 = pneg %p171
        %p415 = pneg %p195
        %p416 = pneg %p192
        %p417 = pneg %p216
        %p418 = pneg %p213
        %p419 = pneg %p237
        %p420 = pneg %p234
        %p421 = pneg %p258
        %p422 = pneg %p255
        %p423 = pneg %p279
        %p424 = pneg %p276
        %p425 = pneg %p300
        %p426 = pneg %p297
        %p427 = pneg %p326
        %p428 = pneg %p323
        %s429 = sand.u32 %s313, 1
        %s430 = scalar_lea.sflag [#allocation5], %s429
        %s431 = sand.u32 %s313, 1
        %s432 = smul.addr %s431, 16
        %s433 = scalar_lea.vmem [#allocation4], %s432
        %p434 = scmp.lt.s32.totalorder %s27, 1
        %s435 = scalar_select %p434, %s27, 1
        %s436 = smul.addr %s435, 2
        %s437 = smul.addr %s436, 8
        %s438 = scalar_lea.vmem %s0, %s437
        %v439 = vld [vmem:[%s438] sm:$0xff]
        %v440 = vld [vmem:[%s438 + $0x8] sm:$0xff]
        %v441 = vld [vmem:[%s1] sm:$0xff]
        %v442 = vld [vmem:[%s1 + $0x8] sm:$0xff]
        %v443 = vld [vmem:[%s1 + $0x10] sm:$0xff]
        %v444 = vld [vmem:[%s1 + $0x18] sm:$0xff]
        %v445 = vld [vmem:[%s1 + $0x20] sm:$0xff]
        %v446 = vld [vmem:[%s1 + $0x28] sm:$0xff]
        %v447 = vld [vmem:[%s1 + $0x30] sm:$0xff]
        %v448 = vld [vmem:[%s1 + $0x38] sm:$0xff]
        %v449 = vld [vmem:[%s1 + $0x40] sm:$0xff]
        %v450 = vld [vmem:[%s1 + $0x48] sm:$0xff]
        %v451 = vld [vmem:[%s1 + $0x50] sm:$0xff]
        %v452 = vld [vmem:[%s1 + $0x58] sm:$0xff]
        %v453 = vld [vmem:[%s1 + $0x60] sm:$0xff]
        %v454 = vld [vmem:[%s1 + $0x68] sm:$0xff]
        %v455 = vld [vmem:[%s1 + $0x70] sm:$0xff]
        %v456 = vld [vmem:[%s1 + $0x78] sm:$0xff]
        %v457 = vld [vmem:[%s1 + $0x80] sm:$0xff]
        %v458 = vld [vmem:[%s1 + $0x88] sm:$0xff]
        %v459 = vld [vmem:[%s1 + $0x90] sm:$0xff]
        %v460 = vld [vmem:[%s1 + $0x98] sm:$0xff]
        %v461 = vld [vmem:[%s1 + $0xa0] sm:$0xff]
        %v462 = vld [vmem:[%s1 + $0xa8] sm:$0xff]
        %v463 = vld [vmem:[%s1 + $0xb0] sm:$0xff]
        %v464 = vld [vmem:[%s1 + $0xb8] sm:$0xff]
        %v465 = vld [vmem:[%s1 + $0xc0] sm:$0xff]
        %v466 = vld [vmem:[%s1 + $0xc8] sm:$0xff]
        %v467 = vld [vmem:[%s1 + $0xd0] sm:$0xff]
        %v468 = vld [vmem:[%s1 + $0xd8] sm:$0xff]
        %v469 = vld [vmem:[%s1 + $0xe0] sm:$0xff]
        %v470 = vld [vmem:[%s1 + $0xe8] sm:$0xff]
        %v471 = vld [vmem:[%s1 + $0xf0] sm:$0xff]
        %v472 = vld [vmem:[%s1 + $0xf8] sm:$0xff]
        %v473 = vld [vmem:[%s1 + $0x100] sm:$0xff]
        %v474 = vld [vmem:[%s1 + $0x108] sm:$0xff]
        %v475 = vld [vmem:[%s1 + $0x110] sm:$0xff]
        %v476 = vld [vmem:[%s1 + $0x118] sm:$0xff]
        %v477 = vld [vmem:[%s1 + $0x120] sm:$0xff]
        %v478 = vld [vmem:[%s1 + $0x128] sm:$0xff]
        %v479 = vld [vmem:[%s1 + $0x130] sm:$0xff]
        %v480 = vld [vmem:[%s1 + $0x138] sm:$0xff]
        %v481 = vld [vmem:[%s1 + $0x140] sm:$0xff]
        %v482 = vld [vmem:[%s1 + $0x148] sm:$0xff]
        %v483 = vld [vmem:[%s1 + $0x150] sm:$0xff]
        %v484 = vld [vmem:[%s1 + $0x158] sm:$0xff]
        %v485 = vld [vmem:[%s1 + $0x160] sm:$0xff]
        %v486 = vld [vmem:[%s1 + $0x168] sm:$0xff]
        %v487 = vld [vmem:[%s1 + $0x170] sm:$0xff]
        %v488 = vld [vmem:[%s1 + $0x178] sm:$0xff]
        %v489 = vld [vmem:[%s2] sm:$0x7]
        %v491 = vlaneseq
        %v492 = vshrl.u32 %v491, 7
        %v493 = vsub.s32 0, %v492
        %v494 = vrot.slane %v489, %v493
        %v495 = vlaneseq
        %v496 = vshrl.u32 %v495, 7
        %v497 = vsub.s32 1, %v496
        %v498 = vrot.slane %v489, %v497
        %v499 = vlaneseq
        %v500 = vshrl.u32 %v499, 7
        %v501 = vsub.s32 2, %v500
        %v502 = vrot.slane %v489, %v501
        %506 = vmatprep.subr.mxu0 %v442
        %507 = vmatpush1.msra.mxu0 %v441
        %508 = vmatprep.subr.mxu0 %v445
        %509 = vmatpush1.msra.mxu0 %v444
        %510 = vmatprep.subr.mxu0 %v448
        %511 = vmatpush1.msra.mxu0 %v447
        %512 = vmatprep.subr.mxu0 %v451
        %513 = vmatpush1.msra.mxu0 %v450
        %514 = vmatprep.subr.mxu0 %v454
        %515 = vmatpush1.msra.mxu0 %v453
        %516 = vmatprep.subr.mxu0 %v457
        %517 = vmatpush1.msra.mxu0 %v456
        %518 = vmatprep.subr.mxu0 %v460
        %519 = vmatpush1.msra.mxu0 %v459
        %520 = vmatprep.subr.mxu0 %v463
        %521 = vmatpush1.msra.mxu0 %v462
        %522 = vmatprep.subr.mxu0 %v466
        %523 = vmatpush1.msra.mxu0 %v465
        %524 = vmatprep.subr.mxu0 %v469
        %525 = vmatpush1.msra.mxu0 %v468
        %526 = vmatprep.subr.mxu0 %v472
        %527 = vmatpush1.msra.mxu0 %v471
        %528 = vmatprep.subr.mxu0 %v475
        %529 = vmatpush1.msra.mxu0 %v474
        %530 = vmatprep.subr.mxu0 %v478
        %531 = vmatpush1.msra.mxu0 %v477
        %532 = vmatprep.subr.mxu0 %v481
        %533 = vmatpush1.msra.mxu0 %v480
        %534 = vmatprep.subr.mxu0 %v484
        %535 = vmatpush1.msra.mxu0 %v483
        %536 = vmatprep.subr.mxu0 %v487
        %537 = vmatpush1.msra.mxu0 %v486
        %538 = vmatprep.subr.mxu0 0.0
        %539 = vmatpush1.msra.mxu0 0.0
        %540 = vmatprep.subr.mxu0 0.0
        %541 = vmatpush1.msra.mxu0 0.0
        %542 = vmatprep.subr.mxu0 0.0
        %543 = vmatpush1.msra.mxu0 0.0
        %544 = vmatprep.subr.mxu0 0.0
        %545 = vmatpush1.msra.mxu0 0.0
        %546 = vmatprep.subr.mxu0 0.0
        %547 = vmatpush1.msra.mxu0 0.0
        %548 = vmatprep.subr.mxu0 0.0
        %549 = vmatpush1.msra.mxu0 0.0
        %550 = vmatprep.subr.mxu0 0.0
        %551 = vmatpush1.msra.mxu0 0.0
        %552 = vmatprep.subr.mxu0 0.0
        %553 = vmatpush1.msra.mxu0 0.0
        %554 = vmatprep.subr.mxu0 0.0
        %555 = vmatpush1.msra.mxu0 0.0
        %556 = vmatprep.subr.mxu0 0.0
        %557 = vmatpush1.msra.mxu0 0.0
        %558 = vmatprep.subr.mxu0 0.0
        %559 = vmatpush1.msra.mxu0 0.0
        %560 = vmatprep.subr.mxu0 0.0
        %561 = vmatpush1.msra.mxu0 0.0
        %562 = vmatprep.subr.mxu0 0.0
        %563 = vmatpush1.msra.mxu0 0.0
        %564 = vmatprep.subr.mxu0 0.0
        %565 = vmatpush1.msra.mxu0 0.0
        %566 = vmatprep.subr.mxu0 0.0
        %567 = vmatpush1.msra.mxu0 0.0
        %568 = vmatprep.subr.mxu0 0.0
        %569 = vmatpush1.msra.mxu0 0.0
        %570 = vmatprep.mubr.f32.mxu0 0.0
        %571 = vmatmul.mubr.f32.gmra.mrb[0].mxu0 %v439
        %v572 = vpop.f32.mrb[0].mxu0
        %v573 = vadd.f32 %v494, %v572
        %v574 = vpop.f32.mrb[0].mxu0
        %v575 = vadd.f32 %v498, %v574
        %576 = vmatprep.mubr.f32.mxu0 0.0
        %577 = vmatmul.mubr.f32.gmra.mrb[0].mxu0 %v440
        %v578 = vpop.f32.mrb[0].mxu0
        %v579 = vadd.f32 %v494, %v578
        %v580 = vpop.f32.mrb[0].mxu0
        %v581 = vadd.f32 %v498, %v580
        %582 = vdwg.mxu0
        %583 = vmatprep.subr.mxu0 0.0
        %584 = vmatpush1.msra.mxu0 %v443
        %585 = vmatprep.subr.mxu0 0.0
        %586 = vmatpush1.msra.mxu0 %v446
        %587 = vmatprep.subr.mxu0 0.0
        %588 = vmatpush1.msra.mxu0 %v449
        %589 = vmatprep.subr.mxu0 0.0
        %590 = vmatpush1.msra.mxu0 %v452
        %591 = vmatprep.subr.mxu0 0.0
        %592 = vmatpush1.msra.mxu0 %v455
        %593 = vmatprep.subr.mxu0 0.0
        %594 = vmatpush1.msra.mxu0 %v458
        %595 = vmatprep.subr.mxu0 0.0
        %596 = vmatpush1.msra.mxu0 %v461
        %597 = vmatprep.subr.mxu0 0.0
        %598 = vmatpush1.msra.mxu0 %v464
        %599 = vmatprep.subr.mxu0 0.0
        %600 = vmatpush1.msra.mxu0 %v467
        %601 = vmatprep.subr.mxu0 0.0
        %602 = vmatpush1.msra.mxu0 %v470
        %603 = vmatprep.subr.mxu0 0.0
        %604 = vmatpush1.msra.mxu0 %v473
        %605 = vmatprep.subr.mxu0 0.0
        %606 = vmatpush1.msra.mxu0 %v476
        %607 = vmatprep.subr.mxu0 0.0
        %608 = vmatpush1.msra.mxu0 %v479
        %609 = vmatprep.subr.mxu0 0.0
        %610 = vmatpush1.msra.mxu0 %v482
        %611 = vmatprep.subr.mxu0 0.0
        %612 = vmatpush1.msra.mxu0 %v485
        %613 = vmatprep.subr.mxu0 0.0
        %614 = vmatpush1.msra.mxu0 %v488
        %615 = vmatprep.subr.mxu0 0.0
        %616 = vmatpush1.msra.mxu0 0.0
        %617 = vmatprep.subr.mxu0 0.0
        %618 = vmatpush1.msra.mxu0 0.0
        %619 = vmatprep.subr.mxu0 0.0
        %620 = vmatpush1.msra.mxu0 0.0
        %621 = vmatprep.subr.mxu0 0.0
        %622 = vmatpush1.msra.mxu0 0.0
        %623 = vmatprep.subr.mxu0 0.0
        %624 = vmatpush1.msra.mxu0 0.0
        %625 = vmatprep.subr.mxu0 0.0
        %626 = vmatpush1.msra.mxu0 0.0
        %627 = vmatprep.subr.mxu0 0.0
        %628 = vmatpush1.msra.mxu0 0.0
        %629 = vmatprep.subr.mxu0 0.0
        %630 = vmatpush1.msra.mxu0 0.0
        %631 = vmatprep.subr.mxu0 0.0
        %632 = vmatpush1.msra.mxu0 0.0
        %633 = vmatprep.subr.mxu0 0.0
        %634 = vmatpush1.msra.mxu0 0.0
        %635 = vmatprep.subr.mxu0 0.0
        %636 = vmatpush1.msra.mxu0 0.0
        %637 = vmatprep.subr.mxu0 0.0
        %638 = vmatpush1.msra.mxu0 0.0
        %639 = vmatprep.subr.mxu0 0.0
        %640 = vmatpush1.msra.mxu0 0.0
        %641 = vmatprep.subr.mxu0 0.0
        %642 = vmatpush1.msra.mxu0 0.0
        %643 = vmatprep.subr.mxu0 0.0
        %644 = vmatpush1.msra.mxu0 0.0
        %645 = vmatprep.subr.mxu0 0.0
        %646 = vmatpush1.msra.mxu0 0.0
        %647 = vmatprep.mubr.f32.mxu0 0.0
        %648 = vmatmul.mubr.f32.gmra.mrb[0].mxu0 %v439
        %v649 = vpop.f32.mrb[0].mxu0
        %v650 = vadd.f32 %v502, %v649
        %v651 = vpop.f32.mrb[0].mxu0
        %652 = vmatprep.mubr.f32.mxu0 0.0
        %653 = vmatmul.mubr.f32.gmra.mrb[0].mxu0 %v440
        %v654 = vpop.f32.mrb[0].mxu0
        %v655 = vadd.f32 %v502, %v654
        %v656 = vpop.f32.mrb[0].mxu0
        %657 = vdwg.mxu0
        %660 = vrot.lane.b32.xlu0 %v573, 64
        %v661 = vpop.permute.xlu0 %660
        %662 = vrot.lane.b32.xlu0 %v579, 64
        %v663 = vpop.permute.xlu0 %662
        %666 = vrot.lane.b32.xlu0 %v575, 64
        %v667 = vpop.permute.xlu0 %666
        %668 = vrot.lane.b32.xlu0 %v581, 64
        %v669 = vpop.permute.xlu0 %668
        %672 = vrot.lane.b32.xlu0 %v650, 64
        %v673 = vpop.permute.xlu0 %672
        %674 = vrot.lane.b32.xlu0 %v655, 64
        %v675 = vpop.permute.xlu0 %674
        %vm678 = vcmask 523264
        %v679 = vsel %vm678, %v573, 0
        %v681 = vsel %vm678, %v579, 0
        %v683 = vsel %vm678, %v575, 0
        %v685 = vsel %vm678, %v581, 0
        %687 = vmatprep.subr.mxu0 0.0
        %688 = vmatpush1.xpose.msra.mxu0 %v683
        %689 = vmatprep.subr.mxu0 0.0
        %690 = vmatpush1.xpose.msra.mxu0 %v685
        %691 = vmatprep.subr.mxu0 0.0
        %692 = vmatpush1.xpose.msra.mxu0 0.0
        %693 = vmatprep.subr.mxu0 0.0
        %694 = vmatpush1.xpose.msra.mxu0 0.0
        %695 = vmatprep.subr.mxu0 0.0
        %696 = vmatpush1.xpose.msra.mxu0 0.0
        %697 = vmatprep.subr.mxu0 0.0
        %698 = vmatpush1.xpose.msra.mxu0 0.0
        %699 = vmatprep.subr.mxu0 0.0
        %700 = vmatpush1.xpose.msra.mxu0 0.0
        %701 = vmatprep.subr.mxu0 0.0
        %702 = vmatpush1.xpose.msra.mxu0 0.0
        %703 = vmatprep.subr.mxu0 0.0
        %704 = vmatpush1.xpose.msra.mxu0 0.0
        %705 = vmatprep.subr.mxu0 0.0
        %706 = vmatpush1.xpose.msra.mxu0 0.0
        %707 = vmatprep.subr.mxu0 0.0
        %708 = vmatpush1.xpose.msra.mxu0 0.0
        %709 = vmatprep.subr.mxu0 0.0
        %710 = vmatpush1.xpose.msra.mxu0 0.0
        %711 = vmatprep.subr.mxu0 0.0
        %712 = vmatpush1.xpose.msra.mxu0 0.0
        %713 = vmatprep.subr.mxu0 0.0
        %714 = vmatpush1.xpose.msra.mxu0 0.0
        %715 = vmatprep.subr.mxu0 0.0
        %716 = vmatpush1.xpose.msra.mxu0 0.0
        %717 = vmatprep.subr.mxu0 0.0
        %718 = vmatpush1.xpose.msra.mxu0 0.0
        %719 = vmatprep.subr.mxu0 0.0
        %720 = vmatpush1.xpose.msra.mxu0 0.0
        %721 = vmatprep.subr.mxu0 0.0
        %722 = vmatpush1.xpose.msra.mxu0 0.0
        %723 = vmatprep.subr.mxu0 0.0
        %724 = vmatpush1.xpose.msra.mxu0 0.0
        %725 = vmatprep.subr.mxu0 0.0
        %726 = vmatpush1.xpose.msra.mxu0 0.0
        %727 = vmatprep.subr.mxu0 0.0
        %728 = vmatpush1.xpose.msra.mxu0 0.0
        %729 = vmatprep.subr.mxu0 0.0
        %730 = vmatpush1.xpose.msra.mxu0 0.0
        %731 = vmatprep.subr.mxu0 0.0
        %732 = vmatpush1.xpose.msra.mxu0 0.0
        %733 = vmatprep.subr.mxu0 0.0
        %734 = vmatpush1.xpose.msra.mxu0 0.0
        %735 = vmatprep.subr.mxu0 0.0
        %736 = vmatpush1.xpose.msra.mxu0 0.0
        %737 = vmatprep.subr.mxu0 0.0
        %738 = vmatpush1.xpose.msra.mxu0 0.0
        %739 = vmatprep.subr.mxu0 0.0
        %740 = vmatpush1.xpose.msra.mxu0 0.0
        %741 = vmatprep.subr.mxu0 0.0
        %742 = vmatpush1.xpose.msra.mxu0 0.0
        %743 = vmatprep.subr.mxu0 0.0
        %744 = vmatpush1.xpose.msra.mxu0 0.0
        %745 = vmatprep.subr.mxu0 0.0
        %746 = vmatpush1.xpose.msra.mxu0 0.0
        %747 = vmatprep.subr.mxu0 0.0
        %748 = vmatpush1.xpose.msra.mxu0 0.0
        %749 = vmatprep.subr.mxu0 0.0
        %750 = vmatpush1.xpose.msra.mxu0 0.0
        %751 = vmatprep.mubr.f32.mxu0 0.0
        %752 = vmatmul.mubr.f32.gmra.mrb[0].mxu0 %v679
        %v753 = vpop.f32.mrb[0].mxu0
        %v754 = vadd.f32 0.0, %v753
        %v755 = vpop.f32.mrb[0].mxu0
        %756 = vmatprep.mubr.f32.mxu0 0.0
        %757 = vmatmul.mubr.f32.gmra.mrb[0].mxu0 %v681
        %v758 = vpop.f32.mrb[0].mxu0
        %v759 = vadd.f32 0.0, %v758
        %v760 = vpop.f32.mrb[0].mxu0
        %761 = vdwg.mxu0
        %v762 = vsel %vm678, %v661, 0
        %v764 = vsel %vm678, %v663, 0
        %v766 = vsel %vm678, %v667, 0
        %v768 = vsel %vm678, %v669, 0
        %770 = vmatprep.subr.mxu0 0.0
        %771 = vmatpush1.xpose.msra.mxu0 %v766
        %772 = vmatprep.subr.mxu0 0.0
        %773 = vmatpush1.xpose.msra.mxu0 %v768
        %774 = vmatprep.subr.mxu0 0.0
        %775 = vmatpush1.xpose.msra.mxu0 0.0
        %776 = vmatprep.subr.mxu0 0.0
        %777 = vmatpush1.xpose.msra.mxu0 0.0
        %778 = vmatprep.subr.mxu0 0.0
        %779 = vmatpush1.xpose.msra.mxu0 0.0
        %780 = vmatprep.subr.mxu0 0.0
        %781 = vmatpush1.xpose.msra.mxu0 0.0
        %782 = vmatprep.subr.mxu0 0.0
        %783 = vmatpush1.xpose.msra.mxu0 0.0
        %784 = vmatprep.subr.mxu0 0.0
        %785 = vmatpush1.xpose.msra.mxu0 0.0
        %786 = vmatprep.subr.mxu0 0.0
        %787 = vmatpush1.xpose.msra.mxu0 0.0
        %788 = vmatprep.subr.mxu0 0.0
        %789 = vmatpush1.xpose.msra.mxu0 0.0
        %790 = vmatprep.subr.mxu0 0.0
        %791 = vmatpush1.xpose.msra.mxu0 0.0
        %792 = vmatprep.subr.mxu0 0.0
        %793 = vmatpush1.xpose.msra.mxu0 0.0
        %794 = vmatprep.subr.mxu0 0.0
        %795 = vmatpush1.xpose.msra.mxu0 0.0
        %796 = vmatprep.subr.mxu0 0.0
        %797 = vmatpush1.xpose.msra.mxu0 0.0
        %798 = vmatprep.subr.mxu0 0.0
        %799 = vmatpush1.xpose.msra.mxu0 0.0
        %800 = vmatprep.subr.mxu0 0.0
        %801 = vmatpush1.xpose.msra.mxu0 0.0
        %802 = vmatprep.subr.mxu0 0.0
        %803 = vmatpush1.xpose.msra.mxu0 0.0
        %804 = vmatprep.subr.mxu0 0.0
        %805 = vmatpush1.xpose.msra.mxu0 0.0
        %806 = vmatprep.subr.mxu0 0.0
        %807 = vmatpush1.xpose.msra.mxu0 0.0
        %808 = vmatprep.subr.mxu0 0.0
        %809 = vmatpush1.xpose.msra.mxu0 0.0
        %810 = vmatprep.subr.mxu0 0.0
        %811 = vmatpush1.xpose.msra.mxu0 0.0
        %812 = vmatprep.subr.mxu0 0.0
        %813 = vmatpush1.xpose.msra.mxu0 0.0
        %814 = vmatprep.subr.mxu0 0.0
        %815 = vmatpush1.xpose.msra.mxu0 0.0
        %816 = vmatprep.subr.mxu0 0.0
        %817 = vmatpush1.xpose.msra.mxu0 0.0
        %818 = vmatprep.subr.mxu0 0.0
        %819 = vmatpush1.xpose.msra.mxu0 0.0
        %820 = vmatprep.subr.mxu0 0.0
        %821 = vmatpush1.xpose.msra.mxu0 0.0
        %822 = vmatprep.subr.mxu0 0.0
        %823 = vmatpush1.xpose.msra.mxu0 0.0
        %824 = vmatprep.subr.mxu0 0.0
        %825 = vmatpush1.xpose.msra.mxu0 0.0
        %826 = vmatprep.subr.mxu0 0.0
        %827 = vmatpush1.xpose.msra.mxu0 0.0
        %828 = vmatprep.subr.mxu0 0.0
        %829 = vmatpush1.xpose.msra.mxu0 0.0
        %830 = vmatprep.subr.mxu0 0.0
        %831 = vmatpush1.xpose.msra.mxu0 0.0
        %832 = vmatprep.subr.mxu0 0.0
        %833 = vmatpush1.xpose.msra.mxu0 0.0
        %834 = vmatprep.mubr.f32.mxu0 0.0
        %835 = vmatmul.mubr.f32.gmra.mrb[0].mxu0 %v762
        %v836 = vpop.f32.mrb[0].mxu0
        %v837 = vadd.f32 0.0, %v836
        %v838 = vpop.f32.mrb[0].mxu0
        %839 = vmatprep.mubr.f32.mxu0 0.0
        %840 = vmatmul.mubr.f32.gmra.mrb[0].mxu0 %v764
        %v841 = vpop.f32.mrb[0].mxu0
        %v842 = vadd.f32 0.0, %v841
        %v843 = vpop.f32.mrb[0].mxu0
        %844 = vdwg.mxu0
        %v845 = vmul.f32 %v754, 0.125
        %v846 = vmul.f32 %v759, 0.125
        %v847 = vmul.f32 %v837, 0.125
        %v848 = vmul.f32 %v842, 0.125
        %vm849 = vcmask 130048
        %v850 = vsel %vm849, %v845, -inf
        %851 = vmax.xlane.f32.xlu0 %v850
        %v852 = vpop.xlane.xlu0 %851
        %v853 = vsel %vm849, %v846, -inf
        %854 = vmax.xlane.f32.xlu0 %v853
        %v855 = vpop.xlane.xlu0 %854
        %v856 = vsel %vm849, %v847, -inf
        %857 = vmax.xlane.f32.xlu0 %v856
        %v858 = vpop.xlane.xlu0 %857
        %v859 = vsel %vm849, %v848, -inf
        %860 = vmax.xlane.f32.xlu0 %v859
        %v861 = vpop.xlane.xlu0 %860
        %v862 = vsub.f32 %v845, %v852
        %v863 = vsub.f32 %v846, %v855
        %v864 = vsub.f32 %v847, %v858
        %v865 = vsub.f32 %v848, %v861
        %v866 = vmul.f32 %v862, 1.442695
        %v867 = vpow.pop %v866
        %v868 = vmul.f32 %v863, 1.442695
        %v869 = vpow.pop %v868
        %v870 = vmul.f32 %v864, 1.442695
        %v871 = vpow.pop %v870
        %v872 = vmul.f32 %v865, 1.442695
        %v873 = vpow.pop %v872
        %v874 = vsel %vm849, %v867, 0.0
        %875 = vadd.xlane.f32.xlu0 %v874
        %v876 = vpop.xlane.xlu0 %875
        %v877 = vsel %vm849, %v869, 0.0
        %878 = vadd.xlane.f32.xlu0 %v877
        %v879 = vpop.xlane.xlu0 %878
        %v880 = vsel %vm849, %v871, 0.0
        %881 = vadd.xlane.f32.xlu0 %v880
        %v882 = vpop.xlane.xlu0 %881
        %v883 = vsel %vm849, %v873, 0.0
        %884 = vadd.xlane.f32.xlu0 %v883
        %v885 = vpop.xlane.xlu0 %884
        %v887 = vsel %vm849, %v867, 0
        %v890 = vsel %vm849, %v869, 0
        %892 = vmatprep.subr.mxu0 0.0
        %893 = vmatpush1.msra.mxu0 %v650
        %894 = vmatprep.subr.mxu0 0.0
        %895 = vmatpush1.msra.mxu0 %v655
        %896 = vmatprep.subr.mxu0 0.0
        %897 = vmatpush1.msra.mxu0 0.0
        %898 = vmatprep.subr.mxu0 0.0
        %899 = vmatpush1.msra.mxu0 0.0
        %900 = vmatprep.subr.mxu0 0.0
        %901 = vmatpush1.msra.mxu0 0.0
        %902 = vmatprep.subr.mxu0 0.0
        %903 = vmatpush1.msra.mxu0 0.0
        %904 = vmatprep.subr.mxu0 0.0
        %905 = vmatpush1.msra.mxu0 0.0
        %906 = vmatprep.subr.mxu0 0.0
        %907 = vmatpush1.msra.mxu0 0.0
        %908 = vmatprep.subr.mxu0 0.0
        %909 = vmatpush1.msra.mxu0 0.0
        %910 = vmatprep.subr.mxu0 0.0
        %911 = vmatpush1.msra.mxu0 0.0
        %912 = vmatprep.subr.mxu0 0.0
        %913 = vmatpush1.msra.mxu0 0.0
        %914 = vmatprep.subr.mxu0 0.0
        %915 = vmatpush1.msra.mxu0 0.0
        %916 = vmatprep.subr.mxu0 0.0
        %917 = vmatpush1.msra.mxu0 0.0
        %918 = vmatprep.subr.mxu0 0.0
        %919 = vmatpush1.msra.mxu0 0.0
        %920 = vmatprep.subr.mxu0 0.0
        %921 = vmatpush1.msra.mxu0 0.0
        %922 = vmatprep.subr.mxu0 0.0
        %923 = vmatpush1.msra.mxu0 0.0
        %924 = vmatprep.subr.mxu0 0.0
        %925 = vmatpush1.msra.mxu0 0.0
        %926 = vmatprep.subr.mxu0 0.0
        %927 = vmatpush1.msra.mxu0 0.0
        %928 = vmatprep.subr.mxu0 0.0
        %929 = vmatpush1.msra.mxu0 0.0
        %930 = vmatprep.subr.mxu0 0.0
        %931 = vmatpush1.msra.mxu0 0.0
        %932 = vmatprep.subr.mxu0 0.0
        %933 = vmatpush1.msra.mxu0 0.0
        %934 = vmatprep.subr.mxu0 0.0
        %935 = vmatpush1.msra.mxu0 0.0
        %936 = vmatprep.subr.mxu0 0.0
        %937 = vmatpush1.msra.mxu0 0.0
        %938 = vmatprep.subr.mxu0 0.0
        %939 = vmatpush1.msra.mxu0 0.0
        %940 = vmatprep.subr.mxu0 0.0
        %941 = vmatpush1.msra.mxu0 0.0
        %942 = vmatprep.subr.mxu0 0.0
        %943 = vmatpush1.msra.mxu0 0.0
        %944 = vmatprep.subr.mxu0 0.0
        %945 = vmatpush1.msra.mxu0 0.0
        %946 = vmatprep.subr.mxu0 0.0
        %947 = vmatpush1.msra.mxu0 0.0
        %948 = vmatprep.subr.mxu0 0.0
        %949 = vmatpush1.msra.mxu0 0.0
        %950 = vmatprep.subr.mxu0 0.0
        %951 = vmatpush1.msra.mxu0 0.0
        %952 = vmatprep.subr.mxu0 0.0
        %953 = vmatpush1.msra.mxu0 0.0
        %954 = vmatprep.subr.mxu0 0.0
        %955 = vmatpush1.msra.mxu0 0.0
        %956 = vmatprep.mubr.f32.mxu0 0.0
        %957 = vmatmul.mubr.f32.gmra.mrb[0].mxu0 %v887
        %v958 = vpop.f32.mrb[0].mxu0
        %v959 = vadd.f32 0.0, %v958
        %v960 = vpop.f32.mrb[0].mxu0
        %961 = vmatprep.mubr.f32.mxu0 0.0
        %962 = vmatmul.mubr.f32.gmra.mrb[0].mxu0 %v890
        %v963 = vpop.f32.mrb[0].mxu0
        %v964 = vadd.f32 0.0, %v963
        %v965 = vpop.f32.mrb[0].mxu0
        %966 = vdwg.mxu0
        %v968 = vsel %vm849, %v871, 0
        %v971 = vsel %vm849, %v873, 0
        %973 = vmatprep.subr.mxu0 0.0
        %974 = vmatpush1.msra.mxu0 %v673
        %975 = vmatprep.subr.mxu0 0.0
        %976 = vmatpush1.msra.mxu0 %v675
        %977 = vmatprep.subr.mxu0 0.0
        %978 = vmatpush1.msra.mxu0 0.0
        %979 = vmatprep.subr.mxu0 0.0
        %980 = vmatpush1.msra.mxu0 0.0
        %981 = vmatprep.subr.mxu0 0.0
        %982 = vmatpush1.msra.mxu0 0.0
        %983 = vmatprep.subr.mxu0 0.0
        %984 = vmatpush1.msra.mxu0 0.0
        %985 = vmatprep.subr.mxu0 0.0
        %986 = vmatpush1.msra.mxu0 0.0
        %987 = vmatprep.subr.mxu0 0.0
        %988 = vmatpush1.msra.mxu0 0.0
        %989 = vmatprep.subr.mxu0 0.0
        %990 = vmatpush1.msra.mxu0 0.0
        %991 = vmatprep.subr.mxu0 0.0
        %992 = vmatpush1.msra.mxu0 0.0
        %993 = vmatprep.subr.mxu0 0.0
        %994 = vmatpush1.msra.mxu0 0.0
        %995 = vmatprep.subr.mxu0 0.0
        %996 = vmatpush1.msra.mxu0 0.0
        %997 = vmatprep.subr.mxu0 0.0
        %998 = vmatpush1.msra.mxu0 0.0
        %999 = vmatprep.subr.mxu0 0.0
        %1000 = vmatpush1.msra.mxu0 0.0
        %1001 = vmatprep.subr.mxu0 0.0
        %1002 = vmatpush1.msra.mxu0 0.0
        %1003 = vmatprep.subr.mxu0 0.0
        %1004 = vmatpush1.msra.mxu0 0.0
        %1005 = vmatprep.subr.mxu0 0.0
        %1006 = vmatpush1.msra.mxu0 0.0
        %1007 = vmatprep.subr.mxu0 0.0
        %1008 = vmatpush1.msra.mxu0 0.0
        %1009 = vmatprep.subr.mxu0 0.0
        %1010 = vmatpush1.msra.mxu0 0.0
        %1011 = vmatprep.subr.mxu0 0.0
        %1012 = vmatpush1.msra.mxu0 0.0
        %1013 = vmatprep.subr.mxu0 0.0
        %1014 = vmatpush1.msra.mxu0 0.0
        %1015 = vmatprep.subr.mxu0 0.0
        %1016 = vmatpush1.msra.mxu0 0.0
        %1017 = vmatprep.subr.mxu0 0.0
        %1018 = vmatpush1.msra.mxu0 0.0
        %1019 = vmatprep.subr.mxu0 0.0
        %1020 = vmatpush1.msra.mxu0 0.0
        %1021 = vmatprep.subr.mxu0 0.0
        %1022 = vmatpush1.msra.mxu0 0.0
        %1023 = vmatprep.subr.mxu0 0.0
        %1024 = vmatpush1.msra.mxu0 0.0
        %1025 = vmatprep.subr.mxu0 0.0
        %1026 = vmatpush1.msra.mxu0 0.0
        %1027 = vmatprep.subr.mxu0 0.0
        %1028 = vmatpush1.msra.mxu0 0.0
        %1029 = vmatprep.subr.mxu0 0.0
        %1030 = vmatpush1.msra.mxu0 0.0
        %1031 = vmatprep.subr.mxu0 0.0
        %1032 = vmatpush1.msra.mxu0 0.0
        %1033 = vmatprep.subr.mxu0 0.0
        %1034 = vmatpush1.msra.mxu0 0.0
        %1035 = vmatprep.subr.mxu0 0.0
        %1036 = vmatpush1.msra.mxu0 0.0
        %1037 = vmatprep.mubr.f32.mxu0 0.0
        %1038 = vmatmul.mubr.f32.gmra.mrb[0].mxu0 %v968
        %v1039 = vpop.f32.mrb[0].mxu0
        %v1040 = vadd.f32 0.0, %v1039
        %v1041 = vpop.f32.mrb[0].mxu0
        %1042 = vmatprep.mubr.f32.mxu0 0.0
        %1043 = vmatmul.mubr.f32.gmra.mrb[0].mxu0 %v971
        %v1044 = vpop.f32.mrb[0].mxu0
        %v1045 = vadd.f32 0.0, %v1044
        %v1046 = vpop.f32.mrb[0].mxu0
        %1047 = vdwg.mxu0
        %v1048 = vrcp.pop %v876
        %v1049 = vrcp.pop %v879
        %v1050 = vrcp.pop %v882
        %v1051 = vrcp.pop %v885
        %v1052 = vmul.f32 %v959, %v1048
        %v1053 = vmul.f32 %v964, %v1049
        %v1054 = vmul.f32 %v1040, %v1050
        %v1055 = vmul.f32 %v1045, %v1051
        %v1056 = vld [vmem:[%s4] sm:$0x1]
        %v1057 = vld [vmem:[%s3] sm:$0xff]
        %v1058 = vld [vmem:[%s3 + $0x8] sm:$0xff]
        %v1059 = vld [vmem:[%s3 + $0x10] sm:$0xff]
        %v1060 = vld [vmem:[%s3 + $0x18] sm:$0xff]
        %v1061 = vld [vmem:[%s3 + $0x20] sm:$0xff]
        %v1062 = vld [vmem:[%s3 + $0x28] sm:$0xff]
        %v1063 = vld [vmem:[%s3 + $0x30] sm:$0xff]
        %v1064 = vld [vmem:[%s3 + $0x38] sm:$0xff]
        %v1066 = vsel %vm678, %v1052, 0
        %v1069 = vsel %vm678, %v1053, 0
        %1071 = vmatprep.subr.mxu0 0.0
        %1072 = vmatpush1.msra.mxu0 %v1057
        %1073 = vmatprep.subr.mxu0 0.0
        %1074 = vmatpush1.msra.mxu0 %v1058
        %1075 = vmatprep.subr.mxu0 0.0
        %1076 = vmatpush1.msra.mxu0 %v1059
        %1077 = vmatprep.subr.mxu0 0.0
        %1078 = vmatpush1.msra.mxu0 %v1060
        %1079 = vmatprep.subr.mxu0 0.0
        %1080 = vmatpush1.msra.mxu0 %v1061
        %1081 = vmatprep.subr.mxu0 0.0
        %1082 = vmatpush1.msra.mxu0 %v1062
        %1083 = vmatprep.subr.mxu0 0.0
        %1084 = vmatpush1.msra.mxu0 %v1063
        %1085 = vmatprep.subr.mxu0 0.0
        %1086 = vmatpush1.msra.mxu0 %v1064
        %1087 = vmatprep.subr.mxu0 0.0
        %1088 = vmatpush1.msra.mxu0 0.0
        %1089 = vmatprep.subr.mxu0 0.0
        %1090 = vmatpush1.msra.mxu0 0.0
        %1091 = vmatprep.subr.mxu0 0.0
        %1092 = vmatpush1.msra.mxu0 0.0
        %1093 = vmatprep.subr.mxu0 0.0
        %1094 = vmatpush1.msra.mxu0 0.0
        %1095 = vmatprep.subr.mxu0 0.0
        %1096 = vmatpush1.msra.mxu0 0.0
        %1097 = vmatprep.subr.mxu0 0.0
        %1098 = vmatpush1.msra.mxu0 0.0
        %1099 = vmatprep.subr.mxu0 0.0
        %1100 = vmatpush1.msra.mxu0 0.0
        %1101 = vmatprep.subr.mxu0 0.0
        %1102 = vmatpush1.msra.mxu0 0.0
        %1103 = vmatprep.subr.mxu0 0.0
        %1104 = vmatpush1.msra.mxu0 0.0
        %1105 = vmatprep.subr.mxu0 0.0
        %1106 = vmatpush1.msra.mxu0 0.0
        %1107 = vmatprep.subr.mxu0 0.0
        %1108 = vmatpush1.msra.mxu0 0.0
        %1109 = vmatprep.subr.mxu0 0.0
        %1110 = vmatpush1.msra.mxu0 0.0
        %1111 = vmatprep.subr.mxu0 0.0
        %1112 = vmatpush1.msra.mxu0 0.0
        %1113 = vmatprep.subr.mxu0 0.0
        %1114 = vmatpush1.msra.mxu0 0.0
        %1115 = vmatprep.subr.mxu0 0.0
        %1116 = vmatpush1.msra.mxu0 0.0
        %1117 = vmatprep.subr.mxu0 0.0
        %1118 = vmatpush1.msra.mxu0 0.0
        %1119 = vmatprep.subr.mxu0 0.0
        %1120 = vmatpush1.msra.mxu0 0.0
        %1121 = vmatprep.subr.mxu0 0.0
        %1122 = vmatpush1.msra.mxu0 0.0
        %1123 = vmatprep.subr.mxu0 0.0
        %1124 = vmatpush1.msra.mxu0 0.0
        %1125 = vmatprep.subr.mxu0 0.0
        %1126 = vmatpush1.msra.mxu0 0.0
        %1127 = vmatprep.subr.mxu0 0.0
        %1128 = vmatpush1.msra.mxu0 0.0
        %1129 = vmatprep.subr.mxu0 0.0
        %1130 = vmatpush1.msra.mxu0 0.0
        %1131 = vmatprep.subr.mxu0 0.0
        %1132 = vmatpush1.msra.mxu0 0.0
        %1133 = vmatprep.subr.mxu0 0.0
        %1134 = vmatpush1.msra.mxu0 0.0
        %1135 = vmatprep.mubr.f32.mxu0 0.0
        %1136 = vmatmul.mubr.f32.gmra.mrb[0].mxu0 %v1066
        %v1137 = vpop.f32.mrb[0].mxu0
        %v1138 = vadd.f32 0.0, %v1137
        %v1139 = vpop.f32.mrb[0].mxu0
        %1140 = vmatprep.mubr.f32.mxu0 0.0
        %1141 = vmatmul.mubr.f32.gmra.mrb[0].mxu0 %v1069
        %v1142 = vpop.f32.mrb[0].mxu0
        %v1143 = vadd.f32 0.0, %v1142
        %v1144 = vpop.f32.mrb[0].mxu0
        %1145 = vdwg.mxu0
        %v1147 = vlaneseq
        %v1148 = vshrl.u32 %v1147, 7
        %v1149 = vsub.s32 0, %v1148
        %v1150 = vrot.slane %v1056, %v1149
        %v1152 = vadd.f32 %v1150, %v1138
        %v1153 = vadd.f32 %v1150, %v1143
        %s1154 = scalar_lea.vmem %s3, 64
        %v1155 = vld [vmem:[%s1154] sm:$0xff]
        %v1156 = vld [vmem:[%s1154 + $0x8] sm:$0xff]
        %v1157 = vld [vmem:[%s1154 + $0x10] sm:$0xff]
        %v1158 = vld [vmem:[%s1154 + $0x18] sm:$0xff]
        %v1159 = vld [vmem:[%s1154 + $0x20] sm:$0xff]
        %v1160 = vld [vmem:[%s1154 + $0x28] sm:$0xff]
        %v1161 = vld [vmem:[%s1154 + $0x30] sm:$0xff]
        %v1162 = vld [vmem:[%s1154 + $0x38] sm:$0xff]
        %v1164 = vsel %vm678, %v1054, 0
        %v1167 = vsel %vm678, %v1055, 0
        %1169 = vmatprep.subr.mxu0 0.0
        %1170 = vmatpush1.msra.mxu0 %v1155
        %1171 = vmatprep.subr.mxu0 0.0
        %1172 = vmatpush1.msra.mxu0 %v1156
        %1173 = vmatprep.subr.mxu0 0.0
        %1174 = vmatpush1.msra.mxu0 %v1157
        %1175 = vmatprep.subr.mxu0 0.0
        %1176 = vmatpush1.msra.mxu0 %v1158
        %1177 = vmatprep.subr.mxu0 0.0
        %1178 = vmatpush1.msra.mxu0 %v1159
        %1179 = vmatprep.subr.mxu0 0.0
        %1180 = vmatpush1.msra.mxu0 %v1160
        %1181 = vmatprep.subr.mxu0 0.0
        %1182 = vmatpush1.msra.mxu0 %v1161
        %1183 = vmatprep.subr.mxu0 0.0
        %1184 = vmatpush1.msra.mxu0 %v1162
        %1185 = vmatprep.subr.mxu0 0.0
        %1186 = vmatpush1.msra.mxu0 0.0
        %1187 = vmatprep.subr.mxu0 0.0
        %1188 = vmatpush1.msra.mxu0 0.0
        %1189 = vmatprep.subr.mxu0 0.0
        %1190 = vmatpush1.msra.mxu0 0.0
        %1191 = vmatprep.subr.mxu0 0.0
        %1192 = vmatpush1.msra.mxu0 0.0
        %1193 = vmatprep.subr.mxu0 0.0
        %1194 = vmatpush1.msra.mxu0 0.0
        %1195 = vmatprep.subr.mxu0 0.0
        %1196 = vmatpush1.msra.mxu0 0.0
        %1197 = vmatprep.subr.mxu0 0.0
        %1198 = vmatpush1.msra.mxu0 0.0
        %1199 = vmatprep.subr.mxu0 0.0
        %1200 = vmatpush1.msra.mxu0 0.0
        %1201 = vmatprep.subr.mxu0 0.0
        %1202 = vmatpush1.msra.mxu0 0.0
        %1203 = vmatprep.subr.mxu0 0.0
        %1204 = vmatpush1.msra.mxu0 0.0
        %1205 = vmatprep.subr.mxu0 0.0
        %1206 = vmatpush1.msra.mxu0 0.0
        %1207 = vmatprep.subr.mxu0 0.0
        %1208 = vmatpush1.msra.mxu0 0.0
        %1209 = vmatprep.subr.mxu0 0.0
        %1210 = vmatpush1.msra.mxu0 0.0
        %1211 = vmatprep.subr.mxu0 0.0
        %1212 = vmatpush1.msra.mxu0 0.0
        %1213 = vmatprep.subr.mxu0 0.0
        %1214 = vmatpush1.msra.mxu0 0.0
        %1215 = vmatprep.subr.mxu0 0.0
        %1216 = vmatpush1.msra.mxu0 0.0
        %1217 = vmatprep.subr.mxu0 0.0
        %1218 = vmatpush1.msra.mxu0 0.0
        %1219 = vmatprep.subr.mxu0 0.0
        %1220 = vmatpush1.msra.mxu0 0.0
        %1221 = vmatprep.subr.mxu0 0.0
        %1222 = vmatpush1.msra.mxu0 0.0
        %1223 = vmatprep.subr.mxu0 0.0
        %1224 = vmatpush1.msra.mxu0 0.0
        %1225 = vmatprep.subr.mxu0 0.0
        %1226 = vmatpush1.msra.mxu0 0.0
        %1227 = vmatprep.subr.mxu0 0.0
        %1228 = vmatpush1.msra.mxu0 0.0
        %1229 = vmatprep.subr.mxu0 0.0
        %1230 = vmatpush1.msra.mxu0 0.0
        %1231 = vmatprep.subr.mxu0 0.0
        %1232 = vmatpush1.msra.mxu0 0.0
        %1233 = vmatprep.mubr.f32.mxu0 0.0
        %1234 = vmatmul.mubr.f32.gmra.mrb[0].mxu0 %v1164
        %v1235 = vpop.f32.mrb[0].mxu0
        %v1236 = vadd.f32 0.0, %v1235
        %v1237 = vpop.f32.mrb[0].mxu0
        %1238 = vmatprep.mubr.f32.mxu0 0.0
        %1239 = vmatmul.mubr.f32.gmra.mrb[0].mxu0 %v1167
        %v1240 = vpop.f32.mrb[0].mxu0
        %v1241 = vadd.f32 0.0, %v1240
        %v1242 = vpop.f32.mrb[0].mxu0
        %1243 = vdwg.mxu0
        %v1244 = vadd.f32 %v1152, %v1236
        %v1245 = vadd.f32 %v1153, %v1241
        %v1246 = vadd.f32 %v1244, %v1244
        %v1247 = vadd.f32 %v1245, %v1245
        %v1248 = vld [vmem:[%s5] sm:$0x1]
        %v1249 = vld [vmem:[%s6] sm:$0x1]
        %1250 = vadd.xlane.f32.xlu0 %v1246
        %v1251 = vpop.xlane.xlu0 %1250
        %1252 = vadd.xlane.f32.xlu0 %v1247
        %v1253 = vpop.xlane.xlu0 %1252
        %v1254 = vrcp.pop 128.0
        %v1255 = vmul.f32 %v1251, %v1254
        %v1256 = vmul.f32 %v1253, %v1254
        %v1257 = vsub.f32 %v1246, %v1255
        %v1258 = vsub.f32 %v1247, %v1256
        %v1259 = vmul.f32 %v1257, %v1257
        %v1260 = vmul.f32 %v1258, %v1258
        %1261 = vadd.xlane.f32.xlu0 %v1259
        %v1262 = vpop.xlane.xlu0 %1261
        %1263 = vadd.xlane.f32.xlu0 %v1260
        %v1264 = vpop.xlane.xlu0 %1263
        %v1265 = vmul.f32 %v1262, %v1254
        %v1266 = vmul.f32 %v1264, %v1254
        %v1267 = vadd.f32 %v1265, 1e-05
        %v1268 = vadd.f32 %v1266, 1e-05
        %v1269 = vrsqrt.pop %v1267
        %v1270 = vrsqrt.pop %v1268
        %v1271 = vmul.f32 %v1257, %v1269
        %v1272 = vmul.f32 %v1258, %v1270
        %v1274 = vlaneseq
        %v1275 = vshrl.u32 %v1274, 7
        %v1276 = vsub.s32 0, %v1275
        %v1277 = vrot.slane %v1248, %v1276
        %v1279 = vmul.f32 %v1271, %v1277
        %v1280 = vmul.f32 %v1272, %v1277
        %v1282 = vlaneseq
        %v1283 = vshrl.u32 %v1282, 7
        %v1284 = vsub.s32 0, %v1283
        %v1285 = vrot.slane %v1249, %v1284
        %v1287 = vadd.f32 %v1279, %v1285
        %v1288 = vadd.f32 %v1280, %v1285
        %1289 = vst [vmem:[#allocation2] sm:$0xff] 0.0
        %1290 = vst [vmem:[#allocation2 + $0x8] sm:$0xff] %v1287
        %1291 = vst [vmem:[#allocation2 + $0x10] sm:$0xff] %v1288
        %1292 = vst [vmem:[#allocation2 + $0x18] sm:$0xff] 0.0
        %v1293 = vld [vmem:[#allocation2] sm:$0xff]
        %v1294 = vld [vmem:[#allocation2 + $0x8] sm:$0xff]
        %v1295 = vld [vmem:[#allocation2 + $0x10] sm:$0xff]
        %v1296 = vld [vmem:[#allocation2 + $0x18] sm:$0xff]
        %v1297 = vld [vmem:[%s8] sm:$0x3]
        %v1298 = vld [vmem:[%s7] sm:$0xff]
        %v1299 = vld [vmem:[%s7 + $0x8] sm:$0xff]
        %v1300 = vld [vmem:[%s7 + $0x10] sm:$0xff]
        %v1301 = vld [vmem:[%s7 + $0x18] sm:$0xff]
        %v1302 = vld [vmem:[%s7 + $0x20] sm:$0xff]
        %v1303 = vld [vmem:[%s7 + $0x28] sm:$0xff]
        %v1304 = vld [vmem:[%s7 + $0x30] sm:$0xff]
        %v1305 = vld [vmem:[%s7 + $0x38] sm:$0xff]
        %v1306 = vld [vmem:[%s7 + $0x40] sm:$0xff]
        %v1307 = vld [vmem:[%s7 + $0x48] sm:$0xff]
        %v1308 = vld [vmem:[%s7 + $0x50] sm:$0xff]
        %v1309 = vld [vmem:[%s7 + $0x58] sm:$0xff]
        %v1310 = vld [vmem:[%s7 + $0x60] sm:$0xff]
        %v1311 = vld [vmem:[%s7 + $0x68] sm:$0xff]
        %v1312 = vld [vmem:[%s7 + $0x70] sm:$0xff]
        %v1313 = vld [vmem:[%s7 + $0x78] sm:$0xff]
        %v1314 = vld [vmem:[%s7 + $0x80] sm:$0xff]
        %v1315 = vld [vmem:[%s7 + $0x88] sm:$0xff]
        %v1316 = vld [vmem:[%s7 + $0x90] sm:$0xff]
        %v1317 = vld [vmem:[%s7 + $0x98] sm:$0xff]
        %v1318 = vld [vmem:[%s7 + $0xa0] sm:$0xff]
        %v1319 = vld [vmem:[%s7 + $0xa8] sm:$0xff]
        %v1320 = vld [vmem:[%s7 + $0xb0] sm:$0xff]
        %v1321 = vld [vmem:[%s7 + $0xb8] sm:$0xff]
        %v1322 = vld [vmem:[%s7 + $0xc0] sm:$0xff]
        %v1323 = vld [vmem:[%s7 + $0xc8] sm:$0xff]
        %v1324 = vld [vmem:[%s7 + $0xd0] sm:$0xff]
        %v1325 = vld [vmem:[%s7 + $0xd8] sm:$0xff]
        %v1326 = vld [vmem:[%s7 + $0xe0] sm:$0xff]
        %v1327 = vld [vmem:[%s7 + $0xe8] sm:$0xff]
        %v1328 = vld [vmem:[%s7 + $0xf0] sm:$0xff]
        %v1329 = vld [vmem:[%s7 + $0xf8] sm:$0xff]
        %vm1333 = vcmask 1040384
        %v1334 = vrot.slane %v1293, 7
        %v1335 = vrot.slane %v1294, 7
        %v1336 = vsel %vm1333, %v1334, %v1335
        %v1337 = vrot.slane %v1295, 7
        %v1338 = vsel %vm1333, %v1335, %v1337
        %1341 = vmatprep.subr.mxu0 %v1299
        %1342 = vmatpush1.msra.mxu0 %v1298
        %1343 = vmatprep.subr.mxu0 %v1301
        %1344 = vmatpush1.msra.mxu0 %v1300
        %1345 = vmatprep.subr.mxu0 %v1303
        %1346 = vmatpush1.msra.mxu0 %v1302
        %1347 = vmatprep.subr.mxu0 %v1305
        %1348 = vmatpush1.msra.mxu0 %v1304
        %1349 = vmatprep.subr.mxu0 %v1307
        %1350 = vmatpush1.msra.mxu0 %v1306
        %1351 = vmatprep.subr.mxu0 %v1309
        %1352 = vmatpush1.msra.mxu0 %v1308
        %1353 = vmatprep.subr.mxu0 %v1311
        %1354 = vmatpush1.msra.mxu0 %v1310
        %1355 = vmatprep.subr.mxu0 %v1313
        %1356 = vmatpush1.msra.mxu0 %v1312
        %1357 = vmatprep.subr.mxu0 %v1315
        %1358 = vmatpush1.msra.mxu0 %v1314
        %1359 = vmatprep.subr.mxu0 %v1317
        %1360 = vmatpush1.msra.mxu0 %v1316
        %1361 = vmatprep.subr.mxu0 %v1319
        %1362 = vmatpush1.msra.mxu0 %v1318
        %1363 = vmatprep.subr.mxu0 %v1321
        %1364 = vmatpush1.msra.mxu0 %v1320
        %1365 = vmatprep.subr.mxu0 %v1323
        %1366 = vmatpush1.msra.mxu0 %v1322
        %1367 = vmatprep.subr.mxu0 %v1325
        %1368 = vmatpush1.msra.mxu0 %v1324
        %1369 = vmatprep.subr.mxu0 %v1327
        %1370 = vmatpush1.msra.mxu0 %v1326
        %1371 = vmatprep.subr.mxu0 %v1329
        %1372 = vmatpush1.msra.mxu0 %v1328
        %1373 = vmatprep.subr.mxu0 0.0
        %1374 = vmatpush1.msra.mxu0 0.0
        %1375 = vmatprep.subr.mxu0 0.0
        %1376 = vmatpush1.msra.mxu0 0.0
        %1377 = vmatprep.subr.mxu0 0.0
        %1378 = vmatpush1.msra.mxu0 0.0
        %1379 = vmatprep.subr.mxu0 0.0
        %1380 = vmatpush1.msra.mxu0 0.0
        %1381 = vmatprep.subr.mxu0 0.0
        %1382 = vmatpush1.msra.mxu0 0.0
        %1383 = vmatprep.subr.mxu0 0.0
        %1384 = vmatpush1.msra.mxu0 0.0
        %1385 = vmatprep.subr.mxu0 0.0
        %1386 = vmatpush1.msra.mxu0 0.0
        %1387 = vmatprep.subr.mxu0 0.0
        %1388 = vmatpush1.msra.mxu0 0.0
        %1389 = vmatprep.subr.mxu0 0.0
        %1390 = vmatpush1.msra.mxu0 0.0
        %1391 = vmatprep.subr.mxu0 0.0
        %1392 = vmatpush1.msra.mxu0 0.0
        %1393 = vmatprep.subr.mxu0 0.0
        %1394 = vmatpush1.msra.mxu0 0.0
        %1395 = vmatprep.subr.mxu0 0.0
        %1396 = vmatpush1.msra.mxu0 0.0
        %1397 = vmatprep.subr.mxu0 0.0
        %1398 = vmatpush1.msra.mxu0 0.0
        %1399 = vmatprep.subr.mxu0 0.0
        %1400 = vmatpush1.msra.mxu0 0.0
        %1401 = vmatprep.subr.mxu0 0.0
        %1402 = vmatpush1.msra.mxu0 0.0
        %1403 = vmatprep.subr.mxu0 0.0
        %1404 = vmatpush1.msra.mxu0 0.0
        %1405 = vmatprep.mubr.f32.mxu0 0.0
        %1406 = vmatmul.mubr.f32.gmra.mrb[0].mxu0 %v1336
        %v1407 = vpop.f32.mrb[0].mxu0
        %v1408 = vadd.f32 0.0, %v1407
        %v1409 = vpop.f32.mrb[0].mxu0
        %v1410 = vadd.f32 0.0, %v1409
        %1411 = vmatprep.mubr.f32.mxu0 0.0
        %1412 = vmatmul.mubr.f32.gmra.mrb[0].mxu0 %v1338
        %v1413 = vpop.f32.mrb[0].mxu0
        %v1414 = vadd.f32 0.0, %v1413
        %v1415 = vpop.f32.mrb[0].mxu0
        %v1416 = vadd.f32 0.0, %v1415
        %1417 = vdwg.mxu0
        %v1419 = vlaneseq
        %v1420 = vshrl.u32 %v1419, 7
        %v1421 = vsub.s32 0, %v1420
        %v1422 = vrot.slane %v1297, %v1421
        %v1423 = vlaneseq
        %v1424 = vshrl.u32 %v1423, 7
        %v1425 = vsub.s32 1, %v1424
        %v1426 = vrot.slane %v1297, %v1425
        %v1429 = vadd.f32 %v1422, %v1408
        %v1430 = vadd.f32 %v1426, %v1410
        %v1431 = vadd.f32 %v1422, %v1414
        %v1432 = vadd.f32 %v1426, %v1416
        %s1433 = scalar_lea.vmem %s7, 256
        %v1434 = vld [vmem:[%s1433] sm:$0xff]
        %v1435 = vld [vmem:[%s1433 + $0x8] sm:$0xff]
        %v1436 = vld [vmem:[%s1433 + $0x10] sm:$0xff]
        %v1437 = vld [vmem:[%s1433 + $0x18] sm:$0xff]
        %v1438 = vld [vmem:[%s1433 + $0x20] sm:$0xff]
        %v1439 = vld [vmem:[%s1433 + $0x28] sm:$0xff]
        %v1440 = vld [vmem:[%s1433 + $0x30] sm:$0xff]
        %v1441 = vld [vmem:[%s1433 + $0x38] sm:$0xff]
        %v1442 = vld [vmem:[%s1433 + $0x40] sm:$0xff]
        %v1443 = vld [vmem:[%s1433 + $0x48] sm:$0xff]
        %v1444 = vld [vmem:[%s1433 + $0x50] sm:$0xff]
        %v1445 = vld [vmem:[%s1433 + $0x58] sm:$0xff]
        %v1446 = vld [vmem:[%s1433 + $0x60] sm:$0xff]
        %v1447 = vld [vmem:[%s1433 + $0x68] sm:$0xff]
        %v1448 = vld [vmem:[%s1433 + $0x70] sm:$0xff]
        %v1449 = vld [vmem:[%s1433 + $0x78] sm:$0xff]
        %v1450 = vld [vmem:[%s1433 + $0x80] sm:$0xff]
        %v1451 = vld [vmem:[%s1433 + $0x88] sm:$0xff]
        %v1452 = vld [vmem:[%s1433 + $0x90] sm:$0xff]
        %v1453 = vld [vmem:[%s1433 + $0x98] sm:$0xff]
        %v1454 = vld [vmem:[%s1433 + $0xa0] sm:$0xff]
        %v1455 = vld [vmem:[%s1433 + $0xa8] sm:$0xff]
        %v1456 = vld [vmem:[%s1433 + $0xb0] sm:$0xff]
        %v1457 = vld [vmem:[%s1433 + $0xb8] sm:$0xff]
        %v1458 = vld [vmem:[%s1433 + $0xc0] sm:$0xff]
        %v1459 = vld [vmem:[%s1433 + $0xc8] sm:$0xff]
        %v1460 = vld [vmem:[%s1433 + $0xd0] sm:$0xff]
        %v1461 = vld [vmem:[%s1433 + $0xd8] sm:$0xff]
        %v1462 = vld [vmem:[%s1433 + $0xe0] sm:$0xff]
        %v1463 = vld [vmem:[%s1433 + $0xe8] sm:$0xff]
        %v1464 = vld [vmem:[%s1433 + $0xf0] sm:$0xff]
        %v1465 = vld [vmem:[%s1433 + $0xf8] sm:$0xff]
        %1466 = vmatprep.subr.mxu0 %v1435
        %1467 = vmatpush1.msra.mxu0 %v1434
        %1468 = vmatprep.subr.mxu0 %v1437
        %1469 = vmatpush1.msra.mxu0 %v1436
        %1470 = vmatprep.subr.mxu0 %v1439
        %1471 = vmatpush1.msra.mxu0 %v1438
        %1472 = vmatprep.subr.mxu0 %v1441
        %1473 = vmatpush1.msra.mxu0 %v1440
        %1474 = vmatprep.subr.mxu0 %v1443
        %1475 = vmatpush1.msra.mxu0 %v1442
        %1476 = vmatprep.subr.mxu0 %v1445
        %1477 = vmatpush1.msra.mxu0 %v1444
        %1478 = vmatprep.subr.mxu0 %v1447
        %1479 = vmatpush1.msra.mxu0 %v1446
        %1480 = vmatprep.subr.mxu0 %v1449
        %1481 = vmatpush1.msra.mxu0 %v1448
        %1482 = vmatprep.subr.mxu0 %v1451
        %1483 = vmatpush1.msra.mxu0 %v1450
        %1484 = vmatprep.subr.mxu0 %v1453
        %1485 = vmatpush1.msra.mxu0 %v1452
        %1486 = vmatprep.subr.mxu0 %v1455
        %1487 = vmatpush1.msra.mxu0 %v1454
        %1488 = vmatprep.subr.mxu0 %v1457
        %1489 = vmatpush1.msra.mxu0 %v1456
        %1490 = vmatprep.subr.mxu0 %v1459
        %1491 = vmatpush1.msra.mxu0 %v1458
        %1492 = vmatprep.subr.mxu0 %v1461
        %1493 = vmatpush1.msra.mxu0 %v1460
        %1494 = vmatprep.subr.mxu0 %v1463
        %1495 = vmatpush1.msra.mxu0 %v1462
        %1496 = vmatprep.subr.mxu0 %v1465
        %1497 = vmatpush1.msra.mxu0 %v1464
        %1498 = vmatprep.subr.mxu0 0.0
        %1499 = vmatpush1.msra.mxu0 0.0
        %1500 = vmatprep.subr.mxu0 0.0
        %1501 = vmatpush1.msra.mxu0 0.0
        %1502 = vmatprep.subr.mxu0 0.0
        %1503 = vmatpush1.msra.mxu0 0.0
        %1504 = vmatprep.subr.mxu0 0.0
        %1505 = vmatpush1.msra.mxu0 0.0
        %1506 = vmatprep.subr.mxu0 0.0
        %1507 = vmatpush1.msra.mxu0 0.0
        %1508 = vmatprep.subr.mxu0 0.0
        %1509 = vmatpush1.msra.mxu0 0.0
        %1510 = vmatprep.subr.mxu0 0.0
        %1511 = vmatpush1.msra.mxu0 0.0
        %1512 = vmatprep.subr.mxu0 0.0
        %1513 = vmatpush1.msra.mxu0 0.0
        %1514 = vmatprep.subr.mxu0 0.0
        %1515 = vmatpush1.msra.mxu0 0.0
        %1516 = vmatprep.subr.mxu0 0.0
        %1517 = vmatpush1.msra.mxu0 0.0
        %1518 = vmatprep.subr.mxu0 0.0
        %1519 = vmatpush1.msra.mxu0 0.0
        %1520 = vmatprep.subr.mxu0 0.0
        %1521 = vmatpush1.msra.mxu0 0.0
        %1522 = vmatprep.subr.mxu0 0.0
        %1523 = vmatpush1.msra.mxu0 0.0
        %1524 = vmatprep.subr.mxu0 0.0
        %1525 = vmatpush1.msra.mxu0 0.0
        %1526 = vmatprep.subr.mxu0 0.0
        %1527 = vmatpush1.msra.mxu0 0.0
        %1528 = vmatprep.subr.mxu0 0.0
        %1529 = vmatpush1.msra.mxu0 0.0
        %1530 = vmatprep.mubr.f32.mxu0 0.0
        %1531 = vmatmul.mubr.f32.gmra.mrb[0].mxu0 %v1294
        %v1532 = vpop.f32.mrb[0].mxu0
        %v1533 = vadd.f32 0.0, %v1532
        %v1534 = vpop.f32.mrb[0].mxu0
        %v1535 = vadd.f32 0.0, %v1534
        %1536 = vmatprep.mubr.f32.mxu0 0.0
        %1537 = vmatmul.mubr.f32.gmra.mrb[0].mxu0 %v1295
        %v1538 = vpop.f32.mrb[0].mxu0
        %v1539 = vadd.f32 0.0, %v1538
        %v1540 = vpop.f32.mrb[0].mxu0
        %v1541 = vadd.f32 0.0, %v1540
        %1542 = vdwg.mxu0
        %v1543 = vadd.f32 %v1429, %v1533
        %v1544 = vadd.f32 %v1430, %v1535
        %v1545 = vadd.f32 %v1431, %v1539
        %v1546 = vadd.f32 %v1432, %v1541
        %s1547 = scalar_lea.vmem %s7, 512
        %v1548 = vld [vmem:[%s1547] sm:$0xff]
        %v1549 = vld [vmem:[%s1547 + $0x8] sm:$0xff]
        %v1550 = vld [vmem:[%s1547 + $0x10] sm:$0xff]
        %v1551 = vld [vmem:[%s1547 + $0x18] sm:$0xff]
        %v1552 = vld [vmem:[%s1547 + $0x20] sm:$0xff]
        %v1553 = vld [vmem:[%s1547 + $0x28] sm:$0xff]
        %v1554 = vld [vmem:[%s1547 + $0x30] sm:$0xff]
        %v1555 = vld [vmem:[%s1547 + $0x38] sm:$0xff]
        %v1556 = vld [vmem:[%s1547 + $0x40] sm:$0xff]
        %v1557 = vld [vmem:[%s1547 + $0x48] sm:$0xff]
        %v1558 = vld [vmem:[%s1547 + $0x50] sm:$0xff]
        %v1559 = vld [vmem:[%s1547 + $0x58] sm:$0xff]
        %v1560 = vld [vmem:[%s1547 + $0x60] sm:$0xff]
        %v1561 = vld [vmem:[%s1547 + $0x68] sm:$0xff]
        %v1562 = vld [vmem:[%s1547 + $0x70] sm:$0xff]
        %v1563 = vld [vmem:[%s1547 + $0x78] sm:$0xff]
        %v1564 = vld [vmem:[%s1547 + $0x80] sm:$0xff]
        %v1565 = vld [vmem:[%s1547 + $0x88] sm:$0xff]
        %v1566 = vld [vmem:[%s1547 + $0x90] sm:$0xff]
        %v1567 = vld [vmem:[%s1547 + $0x98] sm:$0xff]
        %v1568 = vld [vmem:[%s1547 + $0xa0] sm:$0xff]
        %v1569 = vld [vmem:[%s1547 + $0xa8] sm:$0xff]
        %v1570 = vld [vmem:[%s1547 + $0xb0] sm:$0xff]
        %v1571 = vld [vmem:[%s1547 + $0xb8] sm:$0xff]
        %v1572 = vld [vmem:[%s1547 + $0xc0] sm:$0xff]
        %v1573 = vld [vmem:[%s1547 + $0xc8] sm:$0xff]
        %v1574 = vld [vmem:[%s1547 + $0xd0] sm:$0xff]
        %v1575 = vld [vmem:[%s1547 + $0xd8] sm:$0xff]
        %v1576 = vld [vmem:[%s1547 + $0xe0] sm:$0xff]
        %v1577 = vld [vmem:[%s1547 + $0xe8] sm:$0xff]
        %v1578 = vld [vmem:[%s1547 + $0xf0] sm:$0xff]
        %v1579 = vld [vmem:[%s1547 + $0xf8] sm:$0xff]
        %vm1581 = vcmask 1046528
        %v1582 = vrot.slane %v1294, 1
        %v1583 = vrot.slane %v1295, 1
        %v1584 = vsel %vm1581, %v1582, %v1583
        %v1585 = vrot.slane %v1296, 1
        %v1586 = vsel %vm1581, %v1583, %v1585
        %1589 = vmatprep.subr.mxu0 %v1549
        %1590 = vmatpush1.msra.mxu0 %v1548
        %1591 = vmatprep.subr.mxu0 %v1551
        %1592 = vmatpush1.msra.mxu0 %v1550
        %1593 = vmatprep.subr.mxu0 %v1553
        %1594 = vmatpush1.msra.mxu0 %v1552
        %1595 = vmatprep.subr.mxu0 %v1555
        %1596 = vmatpush1.msra.mxu0 %v1554
        %1597 = vmatprep.subr.mxu0 %v1557
        %1598 = vmatpush1.msra.mxu0 %v1556
        %1599 = vmatprep.subr.mxu0 %v1559
        %1600 = vmatpush1.msra.mxu0 %v1558
        %1601 = vmatprep.subr.mxu0 %v1561
        %1602 = vmatpush1.msra.mxu0 %v1560
        %1603 = vmatprep.subr.mxu0 %v1563
        %1604 = vmatpush1.msra.mxu0 %v1562
        %1605 = vmatprep.subr.mxu0 %v1565
        %1606 = vmatpush1.msra.mxu0 %v1564
        %1607 = vmatprep.subr.mxu0 %v1567
        %1608 = vmatpush1.msra.mxu0 %v1566
        %1609 = vmatprep.subr.mxu0 %v1569
        %1610 = vmatpush1.msra.mxu0 %v1568
        %1611 = vmatprep.subr.mxu0 %v1571
        %1612 = vmatpush1.msra.mxu0 %v1570
        %1613 = vmatprep.subr.mxu0 %v1573
        %1614 = vmatpush1.msra.mxu0 %v1572
        %1615 = vmatprep.subr.mxu0 %v1575
        %1616 = vmatpush1.msra.mxu0 %v1574
        %1617 = vmatprep.subr.mxu0 %v1577
        %1618 = vmatpush1.msra.mxu0 %v1576
        %1619 = vmatprep.subr.mxu0 %v1579
        %1620 = vmatpush1.msra.mxu0 %v1578
        %1621 = vmatprep.subr.mxu0 0.0
        %1622 = vmatpush1.msra.mxu0 0.0
        %1623 = vmatprep.subr.mxu0 0.0
        %1624 = vmatpush1.msra.mxu0 0.0
        %1625 = vmatprep.subr.mxu0 0.0
        %1626 = vmatpush1.msra.mxu0 0.0
        %1627 = vmatprep.subr.mxu0 0.0
        %1628 = vmatpush1.msra.mxu0 0.0
        %1629 = vmatprep.subr.mxu0 0.0
        %1630 = vmatpush1.msra.mxu0 0.0
        %1631 = vmatprep.subr.mxu0 0.0
        %1632 = vmatpush1.msra.mxu0 0.0
        %1633 = vmatprep.subr.mxu0 0.0
        %1634 = vmatpush1.msra.mxu0 0.0
        %1635 = vmatprep.subr.mxu0 0.0
        %1636 = vmatpush1.msra.mxu0 0.0
        %1637 = vmatprep.subr.mxu0 0.0
        %1638 = vmatpush1.msra.mxu0 0.0
        %1639 = vmatprep.subr.mxu0 0.0
        %1640 = vmatpush1.msra.mxu0 0.0
        %1641 = vmatprep.subr.mxu0 0.0
        %1642 = vmatpush1.msra.mxu0 0.0
        %1643 = vmatprep.subr.mxu0 0.0
        %1644 = vmatpush1.msra.mxu0 0.0
        %1645 = vmatprep.subr.mxu0 0.0
        %1646 = vmatpush1.msra.mxu0 0.0
        %1647 = vmatprep.subr.mxu0 0.0
        %1648 = vmatpush1.msra.mxu0 0.0
        %1649 = vmatprep.subr.mxu0 0.0
        %1650 = vmatpush1.msra.mxu0 0.0
        %1651 = vmatprep.subr.mxu0 0.0
        %1652 = vmatpush1.msra.mxu0 0.0
        %1653 = vmatprep.mubr.f32.mxu0 0.0
        %1654 = vmatmul.mubr.f32.gmra.mrb[0].mxu0 %v1584
        %v1655 = vpop.f32.mrb[0].mxu0
        %v1656 = vadd.f32 0.0, %v1655
        %v1657 = vpop.f32.mrb[0].mxu0
        %v1658 = vadd.f32 0.0, %v1657
        %1659 = vmatprep.mubr.f32.mxu0 0.0
        %1660 = vmatmul.mubr.f32.gmra.mrb[0].mxu0 %v1586
        %v1661 = vpop.f32.mrb[0].mxu0
        %v1662 = vadd.f32 0.0, %v1661
        %v1663 = vpop.f32.mrb[0].mxu0
        %v1664 = vadd.f32 0.0, %v1663
        %1665 = vdwg.mxu0
        %v1666 = vadd.f32 %v1543, %v1656
        %v1667 = vadd.f32 %v1544, %v1658
        %v1668 = vadd.f32 %v1545, %v1662
        %v1669 = vadd.f32 %v1546, %v1664
        %v1670 = vmul.f32 %v1666, 0.5
        %v1671 = vmul.f32 %v1667, 0.5
        %v1672 = vmul.f32 %v1668, 0.5
        %v1673 = vmul.f32 %v1669, 0.5
        %v1674 = vmul.f32 %v1666, 0.70710677
        %v1675 = vmul.f32 %v1667, 0.70710677
        %v1676 = vmul.f32 %v1668, 0.70710677
        %v1677 = vmul.f32 %v1669, 0.70710677
        %v1678 = verf.f32.pop %v1674
        %v1679 = verf.f32.pop %v1675
        %v1680 = verf.f32.pop %v1676
        %v1681 = verf.f32.pop %v1677
        %v1682 = vadd.f32 %v1678, 1.0
        %v1683 = vadd.f32 %v1679, 1.0
        %v1684 = vadd.f32 %v1680, 1.0
        %v1685 = vadd.f32 %v1681, 1.0
        %v1686 = vmul.f32 %v1670, %v1682
        %v1687 = vmul.f32 %v1671, %v1683
        %v1688 = vmul.f32 %v1672, %v1684
        %v1689 = vmul.f32 %v1673, %v1685
        %1690 = vst [vmem:[#allocation3] sm:$0xff] 0.0
        %1691 = vst [vmem:[#allocation3 + $0x8] sm:$0xff] 0.0
        %1692 = vst [vmem:[#allocation3 + $0x10] sm:$0xff] %v1686
        %1693 = vst [vmem:[#allocation3 + $0x18] sm:$0xff] %v1687
        %1694 = vst [vmem:[#allocation3 + $0x20] sm:$0xff] %v1688
        %1695 = vst [vmem:[#allocation3 + $0x28] sm:$0xff] %v1689
        %1696 = vst [vmem:[#allocation3 + $0x30] sm:$0xff] 0.0
        %1697 = vst [vmem:[#allocation3 + $0x38] sm:$0xff] 0.0
        %v1698 = vld [vmem:[#allocation3] sm:$0xff]
        %v1699 = vld [vmem:[#allocation3 + $0x8] sm:$0xff]
        %v1700 = vld [vmem:[#allocation3 + $0x10] sm:$0xff]
        %v1701 = vld [vmem:[#allocation3 + $0x18] sm:$0xff]
        %v1702 = vld [vmem:[#allocation3 + $0x20] sm:$0xff]
        %v1703 = vld [vmem:[#allocation3 + $0x28] sm:$0xff]
        %v1704 = vld [vmem:[#allocation3 + $0x30] sm:$0xff]
        %v1705 = vld [vmem:[#allocation3 + $0x38] sm:$0xff]
        %v1706 = vld [vmem:[%s10] sm:$0x1]
        %v1707 = vld [vmem:[%s9] sm:$0xff]
        %v1708 = vld [vmem:[%s9 + $0x8] sm:$0xff]
        %v1709 = vld [vmem:[%s9 + $0x10] sm:$0xff]
        %v1710 = vld [vmem:[%s9 + $0x18] sm:$0xff]
        %v1711 = vld [vmem:[%s9 + $0x20] sm:$0xff]
        %v1712 = vld [vmem:[%s9 + $0x28] sm:$0xff]
        %v1713 = vld [vmem:[%s9 + $0x30] sm:$0xff]
        %v1714 = vld [vmem:[%s9 + $0x38] sm:$0xff]
        %v1715 = vld [vmem:[%s9 + $0x40] sm:$0xff]
        %v1716 = vld [vmem:[%s9 + $0x48] sm:$0xff]
        %v1717 = vld [vmem:[%s9 + $0x50] sm:$0xff]
        %v1718 = vld [vmem:[%s9 + $0x58] sm:$0xff]
        %v1719 = vld [vmem:[%s9 + $0x60] sm:$0xff]
        %v1720 = vld [vmem:[%s9 + $0x68] sm:$0xff]
        %v1721 = vld [vmem:[%s9 + $0x70] sm:$0xff]
        %v1722 = vld [vmem:[%s9 + $0x78] sm:$0xff]
        %v1723 = vld [vmem:[%s9 + $0x80] sm:$0xff]
        %v1724 = vld [vmem:[%s9 + $0x88] sm:$0xff]
        %v1725 = vld [vmem:[%s9 + $0x90] sm:$0xff]
        %v1726 = vld [vmem:[%s9 + $0x98] sm:$0xff]
        %v1727 = vld [vmem:[%s9 + $0xa0] sm:$0xff]
        %v1728 = vld [vmem:[%s9 + $0xa8] sm:$0xff]
        %v1729 = vld [vmem:[%s9 + $0xb0] sm:$0xff]
        %v1730 = vld [vmem:[%s9 + $0xb8] sm:$0xff]
        %v1731 = vld [vmem:[%s9 + $0xc0] sm:$0xff]
        %v1732 = vld [vmem:[%s9 + $0xc8] sm:$0xff]
        %v1733 = vld [vmem:[%s9 + $0xd0] sm:$0xff]
        %v1734 = vld [vmem:[%s9 + $0xd8] sm:$0xff]
        %v1735 = vld [vmem:[%s9 + $0xe0] sm:$0xff]
        %v1736 = vld [vmem:[%s9 + $0xe8] sm:$0xff]
        %v1737 = vld [vmem:[%s9 + $0xf0] sm:$0xff]
        %v1738 = vld [vmem:[%s9 + $0xf8] sm:$0xff]
        %v1745 = vrot.slane %v1698, 7
        %v1746 = vrot.slane %v1700, 7
        %v1747 = vsel %vm1333, %v1745, %v1746
        %v1748 = vrot.slane %v1699, 7
        %v1749 = vrot.slane %v1701, 7
        %v1750 = vsel %vm1333, %v1748, %v1749
        %v1751 = vrot.slane %v1702, 7
        %v1752 = vsel %vm1333, %v1746, %v1751
        %v1753 = vrot.slane %v1703, 7
        %v1754 = vsel %vm1333, %v1749, %v1753
        %1759 = vmatprep.subr.mxu0 0.0
        %1760 = vmatpush1.msra.mxu0 %v1707
        %1761 = vmatprep.subr.mxu0 0.0
        %1762 = vmatpush1.msra.mxu0 %v1708
        %1763 = vmatprep.subr.mxu0 0.0
        %1764 = vmatpush1.msra.mxu0 %v1709
        %1765 = vmatprep.subr.mxu0 0.0
        %1766 = vmatpush1.msra.mxu0 %v1710
        %1767 = vmatprep.subr.mxu0 0.0
        %1768 = vmatpush1.msra.mxu0 %v1711
        %1769 = vmatprep.subr.mxu0 0.0
        %1770 = vmatpush1.msra.mxu0 %v1712
        %1771 = vmatprep.subr.mxu0 0.0
        %1772 = vmatpush1.msra.mxu0 %v1713
        %1773 = vmatprep.subr.mxu0 0.0
        %1774 = vmatpush1.msra.mxu0 %v1714
        %1775 = vmatprep.subr.mxu0 0.0
        %1776 = vmatpush1.msra.mxu0 %v1715
        %1777 = vmatprep.subr.mxu0 0.0
        %1778 = vmatpush1.msra.mxu0 %v1716
        %1779 = vmatprep.subr.mxu0 0.0
        %1780 = vmatpush1.msra.mxu0 %v1717
        %1781 = vmatprep.subr.mxu0 0.0
        %1782 = vmatpush1.msra.mxu0 %v1718
        %1783 = vmatprep.subr.mxu0 0.0
        %1784 = vmatpush1.msra.mxu0 %v1719
        %1785 = vmatprep.subr.mxu0 0.0
        %1786 = vmatpush1.msra.mxu0 %v1720
        %1787 = vmatprep.subr.mxu0 0.0
        %1788 = vmatpush1.msra.mxu0 %v1721
        %1789 = vmatprep.subr.mxu0 0.0
        %1790 = vmatpush1.msra.mxu0 %v1722
        %1791 = vmatprep.subr.mxu0 0.0
        %1792 = vmatpush1.msra.mxu0 %v1723
        %1793 = vmatprep.subr.mxu0 0.0
        %1794 = vmatpush1.msra.mxu0 %v1724
        %1795 = vmatprep.subr.mxu0 0.0
        %1796 = vmatpush1.msra.mxu0 %v1725
        %1797 = vmatprep.subr.mxu0 0.0
        %1798 = vmatpush1.msra.mxu0 %v1726
        %1799 = vmatprep.subr.mxu0 0.0
        %1800 = vmatpush1.msra.mxu0 %v1727
        %1801 = vmatprep.subr.mxu0 0.0
        %1802 = vmatpush1.msra.mxu0 %v1728
        %1803 = vmatprep.subr.mxu0 0.0
        %1804 = vmatpush1.msra.mxu0 %v1729
        %1805 = vmatprep.subr.mxu0 0.0
        %1806 = vmatpush1.msra.mxu0 %v1730
        %1807 = vmatprep.subr.mxu0 0.0
        %1808 = vmatpush1.msra.mxu0 %v1731
        %1809 = vmatprep.subr.mxu0 0.0
        %1810 = vmatpush1.msra.mxu0 %v1732
        %1811 = vmatprep.subr.mxu0 0.0
        %1812 = vmatpush1.msra.mxu0 %v1733
        %1813 = vmatprep.subr.mxu0 0.0
        %1814 = vmatpush1.msra.mxu0 %v1734
        %1815 = vmatprep.subr.mxu0 0.0
        %1816 = vmatpush1.msra.mxu0 %v1735
        %1817 = vmatprep.subr.mxu0 0.0
        %1818 = vmatpush1.msra.mxu0 %v1736
        %1819 = vmatprep.subr.mxu0 0.0
        %1820 = vmatpush1.msra.mxu0 %v1737
        %1821 = vmatprep.subr.mxu0 0.0
        %1822 = vmatpush1.msra.mxu0 %v1738
        %1823 = vmatprep.mubr.f32.mxu0 %v1750
        %1824 = vmatmul.mubr.f32.gmra.mrb[0].mxu0 %v1747
        %v1825 = vpop.f32.mrb[0].mxu0
        %v1826 = vadd.f32 0.0, %v1825
        %v1827 = vpop.f32.mrb[0].mxu0
        %1828 = vmatprep.mubr.f32.mxu0 %v1754
        %1829 = vmatmul.mubr.f32.gmra.mrb[0].mxu0 %v1752
        %v1830 = vpop.f32.mrb[0].mxu0
        %v1831 = vadd.f32 0.0, %v1830
        %v1832 = vpop.f32.mrb[0].mxu0
        %1833 = vdwg.mxu0
        %v1835 = vlaneseq
        %v1836 = vshrl.u32 %v1835, 7
        %v1837 = vsub.s32 0, %v1836
        %v1838 = vrot.slane %v1706, %v1837
        %v1840 = vadd.f32 %v1838, %v1826
        %v1841 = vadd.f32 %v1838, %v1831
        %s1842 = scalar_lea.vmem %s9, 256
        %v1843 = vld [vmem:[%s1842] sm:$0xff]
        %v1844 = vld [vmem:[%s1842 + $0x8] sm:$0xff]
        %v1845 = vld [vmem:[%s1842 + $0x10] sm:$0xff]
        %v1846 = vld [vmem:[%s1842 + $0x18] sm:$0xff]
        %v1847 = vld [vmem:[%s1842 + $0x20] sm:$0xff]
        %v1848 = vld [vmem:[%s1842 + $0x28] sm:$0xff]
        %v1849 = vld [vmem:[%s1842 + $0x30] sm:$0xff]
        %v1850 = vld [vmem:[%s1842 + $0x38] sm:$0xff]
        %v1851 = vld [vmem:[%s1842 + $0x40] sm:$0xff]
        %v1852 = vld [vmem:[%s1842 + $0x48] sm:$0xff]
        %v1853 = vld [vmem:[%s1842 + $0x50] sm:$0xff]
        %v1854 = vld [vmem:[%s1842 + $0x58] sm:$0xff]
        %v1855 = vld [vmem:[%s1842 + $0x60] sm:$0xff]
        %v1856 = vld [vmem:[%s1842 + $0x68] sm:$0xff]
        %v1857 = vld [vmem:[%s1842 + $0x70] sm:$0xff]
        %v1858 = vld [vmem:[%s1842 + $0x78] sm:$0xff]
        %v1859 = vld [vmem:[%s1842 + $0x80] sm:$0xff]
        %v1860 = vld [vmem:[%s1842 + $0x88] sm:$0xff]
        %v1861 = vld [vmem:[%s1842 + $0x90] sm:$0xff]
        %v1862 = vld [vmem:[%s1842 + $0x98] sm:$0xff]
        %v1863 = vld [vmem:[%s1842 + $0xa0] sm:$0xff]
        %v1864 = vld [vmem:[%s1842 + $0xa8] sm:$0xff]
        %v1865 = vld [vmem:[%s1842 + $0xb0] sm:$0xff]
        %v1866 = vld [vmem:[%s1842 + $0xb8] sm:$0xff]
        %v1867 = vld [vmem:[%s1842 + $0xc0] sm:$0xff]
        %v1868 = vld [vmem:[%s1842 + $0xc8] sm:$0xff]
        %v1869 = vld [vmem:[%s1842 + $0xd0] sm:$0xff]
        %v1870 = vld [vmem:[%s1842 + $0xd8] sm:$0xff]
        %v1871 = vld [vmem:[%s1842 + $0xe0] sm:$0xff]
        %v1872 = vld [vmem:[%s1842 + $0xe8] sm:$0xff]
        %v1873 = vld [vmem:[%s1842 + $0xf0] sm:$0xff]
        %v1874 = vld [vmem:[%s1842 + $0xf8] sm:$0xff]
        %1875 = vmatprep.subr.mxu0 0.0
        %1876 = vmatpush1.msra.mxu0 %v1843
        %1877 = vmatprep.subr.mxu0 0.0
        %1878 = vmatpush1.msra.mxu0 %v1844
        %1879 = vmatprep.subr.mxu0 0.0
        %1880 = vmatpush1.msra.mxu0 %v1845
        %1881 = vmatprep.subr.mxu0 0.0
        %1882 = vmatpush1.msra.mxu0 %v1846
        %1883 = vmatprep.subr.mxu0 0.0
        %1884 = vmatpush1.msra.mxu0 %v1847
        %1885 = vmatprep.subr.mxu0 0.0
        %1886 = vmatpush1.msra.mxu0 %v1848
        %1887 = vmatprep.subr.mxu0 0.0
        %1888 = vmatpush1.msra.mxu0 %v1849
        %1889 = vmatprep.subr.mxu0 0.0
        %1890 = vmatpush1.msra.mxu0 %v1850
        %1891 = vmatprep.subr.mxu0 0.0
        %1892 = vmatpush1.msra.mxu0 %v1851
        %1893 = vmatprep.subr.mxu0 0.0
        %1894 = vmatpush1.msra.mxu0 %v1852
        %1895 = vmatprep.subr.mxu0 0.0
        %1896 = vmatpush1.msra.mxu0 %v1853
        %1897 = vmatprep.subr.mxu0 0.0
        %1898 = vmatpush1.msra.mxu0 %v1854
        %1899 = vmatprep.subr.mxu0 0.0
        %1900 = vmatpush1.msra.mxu0 %v1855
        %1901 = vmatprep.subr.mxu0 0.0
        %1902 = vmatpush1.msra.mxu0 %v1856
        %1903 = vmatprep.subr.mxu0 0.0
        %1904 = vmatpush1.msra.mxu0 %v1857
        %1905 = vmatprep.subr.mxu0 0.0
        %1906 = vmatpush1.msra.mxu0 %v1858
        %1907 = vmatprep.subr.mxu0 0.0
        %1908 = vmatpush1.msra.mxu0 %v1859
        %1909 = vmatprep.subr.mxu0 0.0
        %1910 = vmatpush1.msra.mxu0 %v1860
        %1911 = vmatprep.subr.mxu0 0.0
        %1912 = vmatpush1.msra.mxu0 %v1861
        %1913 = vmatprep.subr.mxu0 0.0
        %1914 = vmatpush1.msra.mxu0 %v1862
        %1915 = vmatprep.subr.mxu0 0.0
        %1916 = vmatpush1.msra.mxu0 %v1863
        %1917 = vmatprep.subr.mxu0 0.0
        %1918 = vmatpush1.msra.mxu0 %v1864
        %1919 = vmatprep.subr.mxu0 0.0
        %1920 = vmatpush1.msra.mxu0 %v1865
        %1921 = vmatprep.subr.mxu0 0.0
        %1922 = vmatpush1.msra.mxu0 %v1866
        %1923 = vmatprep.subr.mxu0 0.0
        %1924 = vmatpush1.msra.mxu0 %v1867
        %1925 = vmatprep.subr.mxu0 0.0
        %1926 = vmatpush1.msra.mxu0 %v1868
        %1927 = vmatprep.subr.mxu0 0.0
        %1928 = vmatpush1.msra.mxu0 %v1869
        %1929 = vmatprep.subr.mxu0 0.0
        %1930 = vmatpush1.msra.mxu0 %v1870
        %1931 = vmatprep.subr.mxu0 0.0
        %1932 = vmatpush1.msra.mxu0 %v1871
        %1933 = vmatprep.subr.mxu0 0.0
        %1934 = vmatpush1.msra.mxu0 %v1872
        %1935 = vmatprep.subr.mxu0 0.0
        %1936 = vmatpush1.msra.mxu0 %v1873
        %1937 = vmatprep.subr.mxu0 0.0
        %1938 = vmatpush1.msra.mxu0 %v1874
        %1939 = vmatprep.mubr.f32.mxu0 %v1701
        %1940 = vmatmul.mubr.f32.gmra.mrb[0].mxu0 %v1700
        %v1941 = vpop.f32.mrb[0].mxu0
        %v1942 = vadd.f32 0.0, %v1941
        %v1943 = vpop.f32.mrb[0].mxu0
        %1944 = vmatprep.mubr.f32.mxu0 %v1703
        %1945 = vmatmul.mubr.f32.gmra.mrb[0].mxu0 %v1702
        %v1946 = vpop.f32.mrb[0].mxu0
        %v1947 = vadd.f32 0.0, %v1946
        %v1948 = vpop.f32.mrb[0].mxu0
        %1949 = vdwg.mxu0
        %v1950 = vadd.f32 %v1840, %v1942
        %v1951 = vadd.f32 %v1841, %v1947
        %s1952 = scalar_lea.vmem %s9, 512
        %v1953 = vld [vmem:[%s1952] sm:$0xff]
        %v1954 = vld [vmem:[%s1952 + $0x8] sm:$0xff]
        %v1955 = vld [vmem:[%s1952 + $0x10] sm:$0xff]
        %v1956 = vld [vmem:[%s1952 + $0x18] sm:$0xff]
        %v1957 = vld [vmem:[%s1952 + $0x20] sm:$0xff]
        %v1958 = vld [vmem:[%s1952 + $0x28] sm:$0xff]
        %v1959 = vld [vmem:[%s1952 + $0x30] sm:$0xff]
        %v1960 = vld [vmem:[%s1952 + $0x38] sm:$0xff]
        %v1961 = vld [vmem:[%s1952 + $0x40] sm:$0xff]
        %v1962 = vld [vmem:[%s1952 + $0x48] sm:$0xff]
        %v1963 = vld [vmem:[%s1952 + $0x50] sm:$0xff]
        %v1964 = vld [vmem:[%s1952 + $0x58] sm:$0xff]
        %v1965 = vld [vmem:[%s1952 + $0x60] sm:$0xff]
        %v1966 = vld [vmem:[%s1952 + $0x68] sm:$0xff]
        %v1967 = vld [vmem:[%s1952 + $0x70] sm:$0xff]
        %v1968 = vld [vmem:[%s1952 + $0x78] sm:$0xff]
        %v1969 = vld [vmem:[%s1952 + $0x80] sm:$0xff]
        %v1970 = vld [vmem:[%s1952 + $0x88] sm:$0xff]
        %v1971 = vld [vmem:[%s1952 + $0x90] sm:$0xff]
        %v1972 = vld [vmem:[%s1952 + $0x98] sm:$0xff]
        %v1973 = vld [vmem:[%s1952 + $0xa0] sm:$0xff]
        %v1974 = vld [vmem:[%s1952 + $0xa8] sm:$0xff]
        %v1975 = vld [vmem:[%s1952 + $0xb0] sm:$0xff]
        %v1976 = vld [vmem:[%s1952 + $0xb8] sm:$0xff]
        %v1977 = vld [vmem:[%s1952 + $0xc0] sm:$0xff]
        %v1978 = vld [vmem:[%s1952 + $0xc8] sm:$0xff]
        %v1979 = vld [vmem:[%s1952 + $0xd0] sm:$0xff]
        %v1980 = vld [vmem:[%s1952 + $0xd8] sm:$0xff]
        %v1981 = vld [vmem:[%s1952 + $0xe0] sm:$0xff]
        %v1982 = vld [vmem:[%s1952 + $0xe8] sm:$0xff]
        %v1983 = vld [vmem:[%s1952 + $0xf0] sm:$0xff]
        %v1984 = vld [vmem:[%s1952 + $0xf8] sm:$0xff]
        %v1987 = vrot.slane %v1700, 1
        %v1988 = vrot.slane %v1702, 1
        %v1989 = vsel %vm1581, %v1987, %v1988
        %v1990 = vrot.slane %v1701, 1
        %v1991 = vrot.slane %v1703, 1
        %v1992 = vsel %vm1581, %v1990, %v1991
        %v1993 = vrot.slane %v1704, 1
        %v1994 = vsel %vm1581, %v1988, %v1993
        %v1995 = vrot.slane %v1705, 1
        %v1996 = vsel %vm1581, %v1991, %v1995
        %2001 = vmatprep.subr.mxu0 0.0
        %2002 = vmatpush1.msra.mxu0 %v1953
        %2003 = vmatprep.subr.mxu0 0.0
        %2004 = vmatpush1.msra.mxu0 %v1954
        %2005 = vmatprep.subr.mxu0 0.0
        %2006 = vmatpush1.msra.mxu0 %v1955
        %2007 = vmatprep.subr.mxu0 0.0
        %2008 = vmatpush1.msra.mxu0 %v1956
        %2009 = vmatprep.subr.mxu0 0.0
        %2010 = vmatpush1.msra.mxu0 %v1957
        %2011 = vmatprep.subr.mxu0 0.0
        %2012 = vmatpush1.msra.mxu0 %v1958
        %2013 = vmatprep.subr.mxu0 0.0
        %2014 = vmatpush1.msra.mxu0 %v1959
        %2015 = vmatprep.subr.mxu0 0.0
        %2016 = vmatpush1.msra.mxu0 %v1960
        %2017 = vmatprep.subr.mxu0 0.0
        %2018 = vmatpush1.msra.mxu0 %v1961
        %2019 = vmatprep.subr.mxu0 0.0
        %2020 = vmatpush1.msra.mxu0 %v1962
        %2021 = vmatprep.subr.mxu0 0.0
        %2022 = vmatpush1.msra.mxu0 %v1963
        %2023 = vmatprep.subr.mxu0 0.0
        %2024 = vmatpush1.msra.mxu0 %v1964
        %2025 = vmatprep.subr.mxu0 0.0
        %2026 = vmatpush1.msra.mxu0 %v1965
        %2027 = vmatprep.subr.mxu0 0.0
        %2028 = vmatpush1.msra.mxu0 %v1966
        %2029 = vmatprep.subr.mxu0 0.0
        %2030 = vmatpush1.msra.mxu0 %v1967
        %2031 = vmatprep.subr.mxu0 0.0
        %2032 = vmatpush1.msra.mxu0 %v1968
        %2033 = vmatprep.subr.mxu0 0.0
        %2034 = vmatpush1.msra.mxu0 %v1969
        %2035 = vmatprep.subr.mxu0 0.0
        %2036 = vmatpush1.msra.mxu0 %v1970
        %2037 = vmatprep.subr.mxu0 0.0
        %2038 = vmatpush1.msra.mxu0 %v1971
        %2039 = vmatprep.subr.mxu0 0.0
        %2040 = vmatpush1.msra.mxu0 %v1972
        %2041 = vmatprep.subr.mxu0 0.0
        %2042 = vmatpush1.msra.mxu0 %v1973
        %2043 = vmatprep.subr.mxu0 0.0
        %2044 = vmatpush1.msra.mxu0 %v1974
        %2045 = vmatprep.subr.mxu0 0.0
        %2046 = vmatpush1.msra.mxu0 %v1975
        %2047 = vmatprep.subr.mxu0 0.0
        %2048 = vmatpush1.msra.mxu0 %v1976
        %2049 = vmatprep.subr.mxu0 0.0
        %2050 = vmatpush1.msra.mxu0 %v1977
        %2051 = vmatprep.subr.mxu0 0.0
        %2052 = vmatpush1.msra.mxu0 %v1978
        %2053 = vmatprep.subr.mxu0 0.0
        %2054 = vmatpush1.msra.mxu0 %v1979
        %2055 = vmatprep.subr.mxu0 0.0
        %2056 = vmatpush1.msra.mxu0 %v1980
        %2057 = vmatprep.subr.mxu0 0.0
        %2058 = vmatpush1.msra.mxu0 %v1981
        %2059 = vmatprep.subr.mxu0 0.0
        %2060 = vmatpush1.msra.mxu0 %v1982
        %2061 = vmatprep.subr.mxu0 0.0
        %2062 = vmatpush1.msra.mxu0 %v1983
        %2063 = vmatprep.subr.mxu0 0.0
        %2064 = vmatpush1.msra.mxu0 %v1984
        %2065 = vmatprep.mubr.f32.mxu0 %v1992
        %2066 = vmatmul.mubr.f32.gmra.mrb[0].mxu0 %v1989
        %v2067 = vpop.f32.mrb[0].mxu0
        %v2068 = vadd.f32 0.0, %v2067
        %v2069 = vpop.f32.mrb[0].mxu0
        %2070 = vmatprep.mubr.f32.mxu0 %v1996
        %2071 = vmatmul.mubr.f32.gmra.mrb[0].mxu0 %v1994
        %v2072 = vpop.f32.mrb[0].mxu0
        %v2073 = vadd.f32 0.0, %v2072
        %v2074 = vpop.f32.mrb[0].mxu0
        %2075 = vdwg.mxu0
        %v2076 = vadd.f32 %v1950, %v2068
        %v2077 = vadd.f32 %v1951, %v2073
        %v2078 = vadd.f32 %v2076, %v1287
        %v2079 = vadd.f32 %v2077, %v1288
        %v2080 = vld [vmem:[%s11] sm:$0x1]
        %v2081 = vld [vmem:[%s12] sm:$0x1]
        %2082 = vadd.xlane.f32.xlu0 %v2078
        %v2083 = vpop.xlane.xlu0 %2082
        %2084 = vadd.xlane.f32.xlu0 %v2079
        %v2085 = vpop.xlane.xlu0 %2084
        %v2086 = vmul.f32 %v2083, %v1254
        %v2087 = vmul.f32 %v2085, %v1254
        %v2088 = vsub.f32 %v2078, %v2086
        %v2089 = vsub.f32 %v2079, %v2087
        %v2090 = vmul.f32 %v2088, %v2088
        %v2091 = vmul.f32 %v2089, %v2089
        %2092 = vadd.xlane.f32.xlu0 %v2090
        %v2093 = vpop.xlane.xlu0 %2092
        %2094 = vadd.xlane.f32.xlu0 %v2091
        %v2095 = vpop.xlane.xlu0 %2094
        %v2096 = vmul.f32 %v2093, %v1254
        %v2097 = vmul.f32 %v2095, %v1254
        %v2098 = vadd.f32 %v2096, 1e-05
        %v2099 = vadd.f32 %v2097, 1e-05
        %v2100 = vrsqrt.pop %v2098
        %v2101 = vrsqrt.pop %v2099
        %v2102 = vmul.f32 %v2088, %v2100
        %v2103 = vmul.f32 %v2089, %v2101
        %v2105 = vlaneseq
        %v2106 = vshrl.u32 %v2105, 7
        %v2107 = vsub.s32 0, %v2106
        %v2108 = vrot.slane %v2080, %v2107
        %v2110 = vmul.f32 %v2102, %v2108
        %v2111 = vmul.f32 %v2103, %v2108
        %v2113 = vlaneseq
        %v2114 = vshrl.u32 %v2113, 7
        %v2115 = vsub.s32 0, %v2114
        %v2116 = vrot.slane %v2081, %v2115
        %v2118 = vadd.f32 %v2110, %v2116
        %v2119 = vadd.f32 %v2111, %v2116
        %2120 = vst [vmem:[%s433] sm:$0xff] %v2118
        %2121 = vst [vmem:[%s433 + $0x8] sm:$0xff] %v2119
        %s2122 = sand.u32 %s313, 1
        %s2123 = scalar_lea.sflag [#allocation5], %s2122
        %s2124 = sand.u32 %s313, 1
        %s2125 = smul.addr %s2124, 16
        %s2126 = scalar_lea.vmem [#allocation4], %s2125
        // Predicated region
        $region73: #{dec_attn_block.1} parent=71 // pred_check
          %p2127 = pneg %p323
        $region74: #{dec_attn_block.1} parent=71 // pred_check_branch
          %2129 = sbr.rel (%p2127) target = $region76
        $region75: #{dec_attn_block.1} parent=71 // pred_region
          %s2131 = ssub.s32 256, 256
          %2132 = vsyncadd %s2123, %s2131
          %s2133 = smul.addr %s27, 2
          %s2134 = smul.addr %s2133, 128
          %s2135 = scalar_lea.hbm %s13, %s2134
          %s2136 = sshll.u32 %s2126, 4
          %s2137 = int_to_ptr.vmem [resolvable:$true] %s2136
          %2142 = dma.vmem_to_hbm [thread:$0]  %s2137, 256, %s2135, %s2123, 128, 128, 8
        $region76: #{dec_attn_block.1} parent=71 // pred_fallthru
          _
      $region72: #{dec_attn_block.1} parent=5 // pred_fallthru
        _
      %p2143 = scmp.le.s32.totalorder 2, %s22
      // Predicated region
      $region77: #{dec_attn_block.1} parent=5 // pred_check
        %p2144 = pneg %p2143
      $region78: #{dec_attn_block.1} parent=5 // pred_check_branch
        %2146 = sbr.rel (%p2144) target = $region80
      $region79: #{dec_attn_block.1} parent=5 // pred_region
        %s2147 = ssub.s32 %s22, 2
        // Predicated region
        $region81: #{dec_attn_block.1} parent=79 // pred_check
          %p2148 = pneg %p329
        $region82: #{dec_attn_block.1} parent=79 // pred_check_branch
          %2150 = sbr.rel (%p2148) target = $region84
        $region83: #{dec_attn_block.1} parent=79 // pred_region
          %s2151 = sand.u32 %s314, 1
          %s2152 = scalar_lea.sflag [#allocation5], %s2151
          %s2153 = sand.u32 %s314, 1
          %s2154 = smul.addr %s2153, 16
          %s2155 = scalar_lea.vmem [#allocation4], %s2154
          %2156 = dma.done %s2152, 256
        $region84: #{dec_attn_block.1} parent=79 // pred_fallthru
          _
      $region80: #{dec_attn_block.1} parent=5 // pred_fallthru
        _
    $region6: #{dec_attn_block.1} parent=1 // loop_footer
      %s26 = sadd.s32 1, %s22
    $region7: #{dec_attn_block.1} parent=1 // loop_footer_branch
      %21 = sbr.rel target = $region3
    $region8: #{dec_attn_block.1} parent=1 // loop_exit
      _
    %2157 = vsyncpa [#allocation5], 1
    %s2158 = scalar_lea.sflag [#allocation5], 1
    %2159 = vsyncpa %s2158, 1

</llo_original>
